<compile_context>
chip_gen: v5e
topology: v5e:2x2
jax: 0.10.0
libtpu: 0.0.40
codegen_flags: <defaults>
</compile_context>

<pallas_src>
import functools

import jax
import jax.numpy as jnp
from jax.experimental import pallas as pl
from jax.experimental.pallas import tpu as pltpu

EPS = 1e-8  # GlobalLayerNorm eps (matches the PyTorch module)


# ---------------------------------------------------------------------------
# Tile picker (respects the (8, 128) block constraints)
# ---------------------------------------------------------------------------

def _pick_channel_tile(C, cap=128):
    """Channel tile for the contraction axis.

    Must be a multiple of 128 (it is the *last* dim of the (Cout, cT) weight
    block) unless it equals the full channel count.  128 also matches the MXU.
    """
    if C % 128 == 0:
        t = max(128, (min(cap, C) // 128) * 128)
        while C % t != 0:
            t -= 128
        return t
    return C


# ---------------------------------------------------------------------------
# Fused kernel: depthwise conv + PReLU + gLN stats + pointwise conv (MXU)
# ---------------------------------------------------------------------------

def _fused_dsconv_kernel(xp_ref, wdw_ref, alpha_ref, wg_ref, wgs_ref, wbs_ref,
                         out_ref, zacc_ref, ssum_ref, ssq_ref,
                         *, taps, dilation, To, inv_cnt):
    # xp_ref:  (1, cT, Tp)   padded input tile
    # wdw_ref: (cT, taps)    depthwise taps
    # alpha_ref: (1, 1)      PReLU parameter
    # wg_ref:  (Cout, cT)    pointwise weight * gamma (channel tile)
    # wgs_ref: (Cout, 1)     sum_c (W*gamma)
    # wbs_ref: (Cout, 1)     W @ beta
    # out_ref: (1, Cout, To) output tile (written once, on the last channel step)
    # zacc_ref:(Cout, To)    VMEM accumulator for (W*gamma) @ y
    # ssum_ref/ssq_ref: (1,1) VMEM accumulators for gLN statistics
    c = pl.program_id(1)

    # --- causal/same depthwise conv as a static tap loop (offsets compile-time) ---
    acc = wdw_ref[:, 0:1] * xp_ref[0, :, 0:To]
    for p in range(1, taps):
        off = p * dilation
        acc = acc + wdw_ref[:, p:p + 1] * xp_ref[0, :, off:off + To]

    # --- PReLU (single learned alpha) ---
    alpha = alpha_ref[...]
    y = jnp.where(acc >= 0.0, acc, alpha * acc)                 # (cT, To)

    # --- partial gLN statistics for this channel tile ---
    ps = jnp.sum(y, axis=(0, 1), keepdims=True)                 # (1, 1)
    pss = jnp.sum(y * y, axis=(0, 1), keepdims=True)            # (1, 1)

    # --- partial pointwise conv on the MXU: (Cout, cT) @ (cT, To) ---
    part = jnp.dot(wg_ref[...], y, preferred_element_type=jnp.float32)

    @pl.when(c == 0)
    def _():
        zacc_ref[...] = part
        ssum_ref[...] = ps
        ssq_ref[...] = pss

    @pl.when(c != 0)
    def _():
        zacc_ref[...] = zacc_ref[...] + part
        ssum_ref[...] = ssum_ref[...] + ps
        ssq_ref[...] = ssq_ref[...] + pss

    # --- finalize: apply the analytic gLN correction, emit lane-dense output ---
    @pl.when(c == pl.num_programs(1) - 1)
    def _():
        mean = ssum_ref[...] * inv_cnt                          # (1, 1)
        var = jnp.maximum(ssq_ref[...] * inv_cnt - mean * mean, 0.0)
        rstd = jax.lax.rsqrt(var + EPS)                         # (1, 1)
        out = rstd * zacc_ref[...] - (rstd * mean) * wgs_ref[...] + wbs_ref[...]
        out_ref[0] = out.astype(out_ref.dtype)


# ---------------------------------------------------------------------------
# Forward pass wrapper
# ---------------------------------------------------------------------------

def depthwise_separable_conv(x, w_dw, alpha, gamma, beta, w_pw,
                             *, padding, dilation, causal=False, stride=1):
    """
    x:     [M, Cin, T]       activation (channels-first, PyTorch NCT)
    w_dw:  [Cin, P]          depthwise Conv1d weight (groups=Cin, no bias)
    alpha: scalar            PReLU parameter
    gamma, beta: [Cin]       GlobalLayerNorm affine parameters
    w_pw:  [Cout, Cin]       pointwise Conv1d weight (kernel 1, no bias)
    """
    # TODO(synk): stride > 1 is accepted by the PyTorch module but not implemented here.
    assert stride == 1, "only stride=1 is supported"
    M, C, T = x.shape
    taps = w_dw.shape[1]
    Cout = w_pw.shape[0]

    # Causal path: pad left only and emit exactly the columns PyTorch keeps after
    # its `x[:, :, :-padding]` chop (no wasted columns, no extra slice pass).
    # TODO(synk): PyTorch's `[:, :, :-0]` quirk when causal and padding == 0 is not replicated.
    left = padding
    right = 0 if causal else padding
    To = T + left + right - dilation * (taps - 1)
    assert To > 0, "output length must be positive"

    xf = x.astype(jnp.float32)
    # TODO(synk): the left/right zero-pad is materialized by XLA (one extra copy of x);
    # it could be folded into the kernel with masked boundary handling.
    xp = jnp.pad(xf, ((0, 0), (0, 0), (left, right)))
    Tp = T + left + right

    # Fold gamma / beta into the pointwise weight (tiny [Cout, Cin] prep in XLA).
    wf = w_pw.astype(jnp.float32)                              # (Cout, C)
    g = gamma.astype(jnp.float32).reshape(1, C)
    b = beta.astype(jnp.float32).reshape(1, C)
    wg = wf * g                                                # (Cout, C)
    wg_sum = jnp.sum(wg, axis=1, keepdims=True)                # (Cout, 1)
    wb_sum = jnp.sum(wf * b, axis=1, keepdims=True)            # (Cout, 1)

    cT = _pick_channel_tile(C)
    nC = C // cT

    out = pl.pallas_call(
        functools.partial(_fused_dsconv_kernel, taps=taps, dilation=dilation,
                          To=To, inv_cnt=1.0 / float(C * To)),
        out_shape=jax.ShapeDtypeStruct((M, Cout, To), jnp.float32),
        grid=(M, nC),
        in_specs=[
            pl.BlockSpec((1, cT, Tp), lambda m, c: (m, c, 0)),      # padded x tile
            pl.BlockSpec((cT, taps), lambda m, c: (c, 0)),          # depthwise taps
            pl.BlockSpec((1, 1), lambda m, c: (0, 0)),              # PReLU alpha
            pl.BlockSpec((Cout, cT), lambda m, c: (0, c)),          # W*gamma tile
            pl.BlockSpec((Cout, 1), lambda m, c: (0, 0)),           # sum_c(W*gamma)
            pl.BlockSpec((Cout, 1), lambda m, c: (0, 0)),           # W @ beta
        ],
        out_specs=pl.BlockSpec((1, Cout, To), lambda m, c: (m, 0, 0)),
        scratch_shapes=[
            pltpu.VMEM((Cout, To), jnp.float32),    # (W*gamma) @ y accumulator
            pltpu.VMEM((1, 1), jnp.float32),        # sum(y)
            pltpu.VMEM((1, 1), jnp.float32),        # sum(y*y)
        ],
        compiler_params=pltpu.CompilerParams(
            dimension_semantics=("parallel", "arbitrary")),
    )(xp, w_dw.astype(jnp.float32),
      jnp.asarray(alpha, jnp.float32).reshape(1, 1),
      wg, wg_sum, wb_sum)
    return out


# ---------------------------------------------------------------------------
# Pure-JAX reference (mirrors the PyTorch forward)
# ---------------------------------------------------------------------------

def _reference(x, w_dw, alpha, gamma, beta, w_pw, padding, dilation, causal):
    P = w_dw.shape[1]
    left = padding
    right = 0 if causal else padding
    To = x.shape[-1] + left + right - dilation * (P - 1)
    xp = jnp.pad(x, ((0, 0), (0, 0), (left, right)))
    y = sum(w_dw[None, :, p:p + 1] * xp[:, :, p * dilation:p * dilation + To]
            for p in range(P))
    y = jnp.where(y >= 0, y, alpha * y)                         # PReLU
    mean = jnp.mean(y, axis=(1, 2), keepdims=True)              # gLN
    var = jnp.mean((y - mean) ** 2, axis=(1, 2), keepdims=True)
    yn = gamma[None, :, None] * (y - mean) / jnp.sqrt(var + EPS) + beta[None, :, None]
    return jnp.einsum("oc,mct->mot", w_pw, yn,                  # pointwise conv
                      precision=jax.lax.Precision.HIGHEST)


# ---------------------------------------------------------------------------
# Main
# ---------------------------------------------------------------------------

if __name__ == "__main__":
    batch, Cin, Cout, T = 2, 256, 128, 256
    kernel_size, dilation, causal = 3, 2, True
    padding = (kernel_size - 1) * dilation          # causal padding, Conv-TasNet style

    key = jax.random.PRNGKey(0)
    k1, k2, k3, k4, k5 = jax.random.split(key, 5)
    x = jax.random.normal(k1, (batch, Cin, T), jnp.float32)
    w_dw = 0.2 * jax.random.normal(k2, (Cin, kernel_size), jnp.float32)
    alpha = jnp.float32(0.25)                       # nn.PReLU() default init
    # Perturb gamma/beta from their reset values so the gLN affine path is exercised.
    gamma = 1.0 + 0.1 * jax.random.normal(k4, (Cin,), jnp.float32)
    beta = 0.1 * jax.random.normal(k5, (Cin,), jnp.float32)
    w_pw = 0.1 * jax.random.normal(k3, (Cout, Cin), jnp.float32)

    fwd = jax.jit(functools.partial(depthwise_separable_conv,
                                    padding=padding, dilation=dilation, causal=causal))
    out = fwd(x, w_dw, alpha, gamma, beta, w_pw)
    jax.block_until_ready(out)

    assert out.shape == (batch, Cout, T), out.shape

    ref = _reference(x, w_dw, alpha, gamma, beta, w_pw, padding, dilation, causal)
    err = float(jnp.max(jnp.abs(out - ref)))
    assert err < 5e-3, f"max abs error {err}"

    print("KERNEL_OK")
</pallas_src>

<mosaic_0001>
module attributes {stable_mosaic.version = 11 : i64} {
  func.func @_fused_dsconv_kernel(%arg0: i32, %arg1: i32, %arg2: memref<1x128x260xf32, #tpu.memory_space<vmem>>, %arg3: memref<128x3xf32, #tpu.memory_space<vmem>>, %arg4: memref<1x1xf32, #tpu.memory_space<vmem>>, %arg5: memref<128x128xf32, #tpu.memory_space<vmem>>, %arg6: memref<128x1xf32, #tpu.memory_space<vmem>>, %arg7: memref<128x1xf32, #tpu.memory_space<vmem>>, %arg8: memref<1x128x256xf32, #tpu.memory_space<vmem>>, %arg9: memref<128x256xf32, #tpu.memory_space<vmem>>, %arg10: memref<1x1xf32, #tpu.memory_space<vmem>>, %arg11: memref<1x1xf32, #tpu.memory_space<vmem>>) attributes {dimension_semantics = [#tpu.dimension_semantics<parallel>, #tpu.dimension_semantics<arbitrary>], iteration_bounds = array<i64: 2, 2>, scalar_prefetch = 0 : i64, scratch_operands = 3 : i64, tpu.core_type = #tpu.core_type<tc>, window_params = [{transform_indices = @transform_0, window_bounds = array<i64: 1, 128, 260>}, {transform_indices = @transform_1, window_bounds = array<i64: 128, 3>}, {pipeline_mode = #tpu.pipeline_mode<synchronous>, transform_indices = @transform_2, window_bounds = array<i64: 1, 1>}, {transform_indices = @transform_3, window_bounds = array<i64: 128, 128>}, {pipeline_mode = #tpu.pipeline_mode<synchronous>, transform_indices = @transform_4, window_bounds = array<i64: 128, 1>}, {pipeline_mode = #tpu.pipeline_mode<synchronous>, transform_indices = @transform_5, window_bounds = array<i64: 128, 1>}, {transform_indices = @transform_6, window_bounds = array<i64: 1, 128, 256>}]} {
    %c0 = arith.constant 0 : index
    %c0_0 = arith.constant 0 : index
    %0 = vector.load %arg3[%c0, %c0_0] : memref<128x3xf32, #tpu.memory_space<vmem>>, vector<128x1xf32>
    %c0_1 = arith.constant 0 : index
    %c0_2 = arith.constant 0 : index
    %c0_3 = arith.constant 0 : index
    %1 = vector.load %arg2[%c0_1, %c0_2, %c0_3] : memref<1x128x260xf32, #tpu.memory_space<vmem>>, vector<1x128x256xf32>
    %2 = vector.shape_cast %1 : vector<1x128x256xf32> to vector<128x256xf32>
    %3 = vector.broadcast %0 : vector<128x1xf32> to vector<128x256xf32>
    %4 = arith.mulf %3, %2 : vector<128x256xf32>
    %c0_4 = arith.constant 0 : index
    %c1 = arith.constant 1 : index
    %5 = vector.load %arg3[%c0_4, %c1] : memref<128x3xf32, #tpu.memory_space<vmem>>, vector<128x1xf32>
    %c0_5 = arith.constant 0 : index
    %c0_6 = arith.constant 0 : index
    %c2 = arith.constant 2 : index
    %6 = vector.load %arg2[%c0_5, %c0_6, %c2] : memref<1x128x260xf32, #tpu.memory_space<vmem>>, vector<1x128x256xf32>
    %7 = vector.shape_cast %6 : vector<1x128x256xf32> to vector<128x256xf32>
    %8 = vector.broadcast %5 : vector<128x1xf32> to vector<128x256xf32>
    %9 = arith.mulf %8, %7 : vector<128x256xf32>
    %10 = arith.addf %4, %9 : vector<128x256xf32>
    %c0_7 = arith.constant 0 : index
    %c2_8 = arith.constant 2 : index
    %11 = vector.load %arg3[%c0_7, %c2_8] : memref<128x3xf32, #tpu.memory_space<vmem>>, vector<128x1xf32>
    %c0_9 = arith.constant 0 : index
    %c0_10 = arith.constant 0 : index
    %c4 = arith.constant 4 : index
    %12 = vector.load %arg2[%c0_9, %c0_10, %c4] : memref<1x128x260xf32, #tpu.memory_space<vmem>>, vector<1x128x256xf32>
    %13 = vector.shape_cast %12 : vector<1x128x256xf32> to vector<128x256xf32>
    %14 = vector.broadcast %11 : vector<128x1xf32> to vector<128x256xf32>
    %15 = arith.mulf %14, %13 : vector<128x256xf32>
    %16 = arith.addf %10, %15 : vector<128x256xf32>
    %c0_11 = arith.constant 0 : index
    %c0_12 = arith.constant 0 : index
    %17 = vector.load %arg4[%c0_11, %c0_12] : memref<1x1xf32, #tpu.memory_space<vmem>>, vector<1x1xf32>
    %cst = arith.constant 0.000000e+00 : f32
    %18 = vector.broadcast %cst : f32 to vector<128x256xf32>
    %19 = arith.cmpf oge, %16, %18 : vector<128x256xf32>
    %20 = vector.broadcast %17 : vector<1x1xf32> to vector<128x256xf32>
    %21 = arith.mulf %20, %16 : vector<128x256xf32>
    %22 = arith.select %19, %16, %21 : vector<128x256xi1>, vector<128x256xf32>
    %23 = vector.shape_cast %22 : vector<128x256xf32> to vector<1x128x256xf32>
    %cst_13 = arith.constant dense<0.000000e+00> : vector<1xf32>
    %24 = vector.multi_reduction <add>, %23, %cst_13 [1, 2] : vector<1x128x256xf32> to vector<1xf32>
    %25 = vector.shape_cast %24 : vector<1xf32> to vector<1x1x1xf32>
    %26 = vector.extract %25[0, 0, 0] : f32 from vector<1x1x1xf32>
    %27 = vector.broadcast %26 : f32 to vector<1x1xf32>
    %28 = arith.mulf %22, %22 : vector<128x256xf32>
    %29 = vector.shape_cast %28 : vector<128x256xf32> to vector<1x128x256xf32>
    %cst_14 = arith.constant dense<0.000000e+00> : vector<1xf32>
    %30 = vector.multi_reduction <add>, %29, %cst_14 [1, 2] : vector<1x128x256xf32> to vector<1xf32>
    %31 = vector.shape_cast %30 : vector<1xf32> to vector<1x1x1xf32>
    %32 = vector.extract %31[0, 0, 0] : f32 from vector<1x1x1xf32>
    %33 = vector.broadcast %32 : f32 to vector<1x1xf32>
    %c0_15 = arith.constant 0 : index
    %c0_16 = arith.constant 0 : index
    %34 = vector.load %arg5[%c0_15, %c0_16] : memref<128x128xf32, #tpu.memory_space<vmem>>, vector<128x128xf32>
    %cst_17 = arith.constant dense<0.000000e+00> : vector<128x256xf32>
    %35 = tpu.matmul %34, %22, %cst_17 {dimension_numbers = #tpu.dot_dimension_numbers<[1], [0], [0], [1], [0, 0, 1, 1], [], []>} : vector<128x128xf32>, vector<128x256xf32>, vector<128x256xf32> -> vector<128x256xf32>
    %c0_i32 = arith.constant 0 : i32
    %36 = arith.cmpi eq, %arg1, %c0_i32 : i32
    %37 = arith.extui %36 : i1 to i32
    %c0_i32_18 = arith.constant 0 : i32
    %38 = arith.cmpi ne, %37, %c0_i32_18 : i32
    scf.if %38 {
      %c0_22 = arith.constant 0 : index
      %c0_23 = arith.constant 0 : index
      %45 = vector.load %arg9[%c0_22, %c0_23] : memref<128x256xf32, #tpu.memory_space<vmem>>, vector<128x256xf32>
      tpu.vector_store %arg9[%c0_22, %c0_23], %35 {strides = array<i32>} : memref<128x256xf32, #tpu.memory_space<vmem>>, vector<128x256xf32>,
      %c0_24 = arith.constant 0 : index
      %c0_25 = arith.constant 0 : index
      %46 = vector.load %arg10[%c0_24, %c0_25] : memref<1x1xf32, #tpu.memory_space<vmem>>, vector<1x1xf32>
      tpu.vector_store %arg10[%c0_24, %c0_25], %27 {strides = array<i32>} : memref<1x1xf32, #tpu.memory_space<vmem>>, vector<1x1xf32>,
      %c0_26 = arith.constant 0 : index
      %c0_27 = arith.constant 0 : index
      %47 = vector.load %arg11[%c0_26, %c0_27] : memref<1x1xf32, #tpu.memory_space<vmem>>, vector<1x1xf32>
      tpu.vector_store %arg11[%c0_26, %c0_27], %33 {strides = array<i32>} : memref<1x1xf32, #tpu.memory_space<vmem>>, vector<1x1xf32>,
    } else {
    }
    %c0_i32_19 = arith.constant 0 : i32
    %39 = arith.cmpi ne, %arg1, %c0_i32_19 : i32
    %40 = arith.extui %39 : i1 to i32
    %c0_i32_20 = arith.constant 0 : i32
    %41 = arith.cmpi ne, %40, %c0_i32_20 : i32
    scf.if %41 {
      %c0_22 = arith.constant 0 : index
      %c0_23 = arith.constant 0 : index
      %45 = vector.load %arg9[%c0_22, %c0_23] : memref<128x256xf32, #tpu.memory_space<vmem>>, vector<128x256xf32>
      %46 = arith.addf %45, %35 : vector<128x256xf32>
      %c0_24 = arith.constant 0 : index
      %c0_25 = arith.constant 0 : index
      %47 = vector.load %arg9[%c0_24, %c0_25] : memref<128x256xf32, #tpu.memory_space<vmem>>, vector<128x256xf32>
      tpu.vector_store %arg9[%c0_24, %c0_25], %46 {strides = array<i32>} : memref<128x256xf32, #tpu.memory_space<vmem>>, vector<128x256xf32>,
      %c0_26 = arith.constant 0 : index
      %c0_27 = arith.constant 0 : index
      %48 = vector.load %arg10[%c0_26, %c0_27] : memref<1x1xf32, #tpu.memory_space<vmem>>, vector<1x1xf32>
      %49 = arith.addf %48, %27 : vector<1x1xf32>
      %c0_28 = arith.constant 0 : index
      %c0_29 = arith.constant 0 : index
      %50 = vector.load %arg10[%c0_28, %c0_29] : memref<1x1xf32, #tpu.memory_space<vmem>>, vector<1x1xf32>
      tpu.vector_store %arg10[%c0_28, %c0_29], %49 {strides = array<i32>} : memref<1x1xf32, #tpu.memory_space<vmem>>, vector<1x1xf32>,
      %c0_30 = arith.constant 0 : index
      %c0_31 = arith.constant 0 : index
      %51 = vector.load %arg11[%c0_30, %c0_31] : memref<1x1xf32, #tpu.memory_space<vmem>>, vector<1x1xf32>
      %52 = arith.addf %51, %33 : vector<1x1xf32>
      %c0_32 = arith.constant 0 : index
      %c0_33 = arith.constant 0 : index
      %53 = vector.load %arg11[%c0_32, %c0_33] : memref<1x1xf32, #tpu.memory_space<vmem>>, vector<1x1xf32>
      tpu.vector_store %arg11[%c0_32, %c0_33], %52 {strides = array<i32>} : memref<1x1xf32, #tpu.memory_space<vmem>>, vector<1x1xf32>,
    } else {
    }
    %c1_i32 = arith.constant 1 : i32
    %42 = arith.cmpi eq, %arg1, %c1_i32 : i32
    %43 = arith.extui %42 : i1 to i32
    %c0_i32_21 = arith.constant 0 : i32
    %44 = arith.cmpi ne, %43, %c0_i32_21 : i32
    scf.if %44 {
      %c0_22 = arith.constant 0 : index
      %c0_23 = arith.constant 0 : index
      %45 = vector.load %arg10[%c0_22, %c0_23] : memref<1x1xf32, #tpu.memory_space<vmem>>, vector<1x1xf32>
      %cst_24 = arith.constant 1.52587891E-5 : f32
      %46 = vector.broadcast %cst_24 : f32 to vector<1x1xf32>
      %47 = arith.mulf %45, %46 : vector<1x1xf32>
      %c0_25 = arith.constant 0 : index
      %c0_26 = arith.constant 0 : index
      %48 = vector.load %arg11[%c0_25, %c0_26] : memref<1x1xf32, #tpu.memory_space<vmem>>, vector<1x1xf32>
      %cst_27 = arith.constant 1.52587891E-5 : f32
      %49 = vector.broadcast %cst_27 : f32 to vector<1x1xf32>
      %50 = arith.mulf %48, %49 : vector<1x1xf32>
      %51 = arith.mulf %47, %47 : vector<1x1xf32>
      %52 = arith.subf %50, %51 : vector<1x1xf32>
      %cst_28 = arith.constant 0.000000e+00 : f32
      %53 = vector.broadcast %cst_28 : f32 to vector<1x1xf32>
      %54 = arith.maximumf %52, %53 : vector<1x1xf32>
      %cst_29 = arith.constant 9.99999993E-9 : f32
      %55 = vector.broadcast %cst_29 : f32 to vector<1x1xf32>
      %56 = arith.addf %54, %55 : vector<1x1xf32>
      %57 = math.rsqrt %56 : vector<1x1xf32>
      %c0_30 = arith.constant 0 : index
      %c0_31 = arith.constant 0 : index
      %58 = vector.load %arg9[%c0_30, %c0_31] : memref<128x256xf32, #tpu.memory_space<vmem>>, vector<128x256xf32>
      %59 = vector.broadcast %57 : vector<1x1xf32> to vector<128x256xf32>
      %60 = arith.mulf %59, %58 : vector<128x256xf32>
      %61 = arith.mulf %57, %47 : vector<1x1xf32>
      %c0_32 = arith.constant 0 : index
      %c0_33 = arith.constant 0 : index
      %62 = vector.load %arg6[%c0_32, %c0_33] : memref<128x1xf32, #tpu.memory_space<vmem>>, vector<128x1xf32>
      %63 = vector.broadcast %61 : vector<1x1xf32> to vector<128x1xf32>
      %64 = arith.mulf %63, %62 : vector<128x1xf32>
      %65 = vector.broadcast %64 : vector<128x1xf32> to vector<128x256xf32>
      %66 = arith.subf %60, %65 : vector<128x256xf32>
      %c0_34 = arith.constant 0 : index
      %c0_35 = arith.constant 0 : index
      %67 = vector.load %arg7[%c0_34, %c0_35] : memref<128x1xf32, #tpu.memory_space<vmem>>, vector<128x1xf32>
      %68 = vector.broadcast %67 : vector<128x1xf32> to vector<128x256xf32>
      %69 = arith.addf %66, %68 : vector<128x256xf32>
      %c0_36 = arith.constant 0 : index
      %c0_37 = arith.constant 0 : index
      %c0_38 = arith.constant 0 : index
      %70 = vector.load %arg8[%c0_36, %c0_37, %c0_38] : memref<1x128x256xf32, #tpu.memory_space<vmem>>, vector<1x128x256xf32>
      %71 = vector.shape_cast %70 : vector<1x128x256xf32> to vector<128x256xf32>
      %72 = vector.shape_cast %69 : vector<128x256xf32> to vector<1x128x256xf32>
      tpu.vector_store %arg8[%c0_36, %c0_37, %c0_38], %72 {strides = array<i32>} : memref<1x128x256xf32, #tpu.memory_space<vmem>>, vector<1x128x256xf32>,
    } else {
    }
    return
  }
  func.func @transform_0(%arg0: i32, %arg1: i32) -> (i32, i32, i32) {
    %c0_i32 = arith.constant 0 : i32
    %c0_i32_0 = arith.constant 0 : i32
    return %arg0, %arg1, %c0_i32 : i32, i32, i32
  }
  func.func @transform_1(%arg0: i32, %arg1: i32) -> (i32, i32) {
    %c0_i32 = arith.constant 0 : i32
    %c0_i32_0 = arith.constant 0 : i32
    return %arg1, %c0_i32 : i32, i32
  }
  func.func @transform_2(%arg0: i32, %arg1: i32) -> (i32, i32) {
    %c0_i32 = arith.constant 0 : i32
    %c0_i32_0 = arith.constant 0 : i32
    %c0_i32_1 = arith.constant 0 : i32
    return %c0_i32, %c0_i32_0 : i32, i32
  }
  func.func @transform_3(%arg0: i32, %arg1: i32) -> (i32, i32) {
    %c0_i32 = arith.constant 0 : i32
    %c0_i32_0 = arith.constant 0 : i32
    return %c0_i32, %arg1 : i32, i32
  }
  func.func @transform_4(%arg0: i32, %arg1: i32) -> (i32, i32) {
    %c0_i32 = arith.constant 0 : i32
    %c0_i32_0 = arith.constant 0 : i32
    %c0_i32_1 = arith.constant 0 : i32
    return %c0_i32, %c0_i32_0 : i32, i32
  }
  func.func @transform_5(%arg0: i32, %arg1: i32) -> (i32, i32) {
    %c0_i32 = arith.constant 0 : i32
    %c0_i32_0 = arith.constant 0 : i32
    %c0_i32_1 = arith.constant 0 : i32
    return %c0_i32, %c0_i32_0 : i32, i32
  }
  func.func @transform_6(%arg0: i32, %arg1: i32) -> (i32, i32, i32) {
    %c0_i32 = arith.constant 0 : i32
    %c0_i32_0 = arith.constant 0 : i32
    %c0_i32_1 = arith.constant 0 : i32
    return %arg0, %c0_i32, %c0_i32_0 : i32, i32, i32
  }
}

</mosaic_0001>

<llo_original>
// kernel: depthwise_separable_conv.1
$region0: #{depthwise_separable_conv.1}
  #allocation0 [shape = 'u32[]', space=smem, size = 0x4, offset = 0x4, fixed_abs, tag = 'smem constant byte address 0x4 - core index']
  #allocation1 [shape = 'u32[72,128]{1,0:T(1,128)}', space=vmem, size = 0x9000, scoped, tag = 'internal scratch']
  #allocation2 [shape = 'f32[128,256]{1,0:T(8,128)}', space=vmem, size = 0x20000, scoped, tag = 'scratch operand']
  #allocation3 [shape = 'f32[1,1]{1,0:T(1,128)}', space=vmem, size = 0x200, scoped, tag = 'scratch operand']
  #allocation4 [shape = 'f32[1,1]{1,0:T(1,128)}', space=vmem, size = 0x200, scoped, tag = 'scratch operand']
  #allocation5 [shape = 'f32[1,1]{1,0:T(1,128)S(1)}', space=vmem, size = 0x200, scoped, tag = 'scoped memory for depthwise_separable_conv.1']
  %s0 = inlined_call_operand.vmem [shape: f32[2,256,260], index: 0, kind: input, shape index: {}]
  %s1 = inlined_call_operand.vmem [shape: f32[256,3], index: 1, kind: input, shape index: {}]
  %s2 = inlined_call_operand.<no memory space> [shape: f32[1,1], index: 2, kind: input, shape index: {}]
  %s3 = inlined_call_operand.vmem [shape: f32[128,256], index: 3, kind: input, shape index: {}]
  %s4 = inlined_call_operand.vmem [shape: f32[128,1], index: 4, kind: input, shape index: {}]
  %s5 = inlined_call_operand.vmem [shape: f32[128,1], index: 5, kind: input, shape index: {}]
  %s6 = inlined_call_operand.hbm [shape: f32[2,128,256], index: 6, kind: output, shape index: {}]
  %s7 = sld [smem:[#allocation0]]
  $region107: #{depthwise_separable_conv.1} parent=0
    _
  %s9 = ssub.s32 1, %s7
  %s10 = scalar_select 0, %s9, %s7
  %v11 = vstv %s2
  %12 = vst [vmem:[#allocation5] sm:$0x1] %v11
  $region1: #{depthwise_separable_conv.1} parent=0
    #allocation6 [shape = 'u8[131072]{0}', space=vmem, size = 0x20000, scoped, tag = 'input window, operand 3']
    #allocation7 [shape = 'u8[262144]{0}', space=vmem, size = 0x40000, scoped, tag = 'output window, operand 0']
    #allocation8 [shape = 's32[2]{0}', space=sflag, size = 0x8, scoped, tag = 'scoped memory for depthwise_separable_conv.1']
    %13 = vsyncpa [#allocation8], 0
    %s14 = scalar_lea.sflag [#allocation8], 1
    %15 = vsyncpa %s14, 0
    loop: start=0, step=1, limit=6
    $region2: #{depthwise_separable_conv.1} parent=1 // loop_pre_header
      _
    $region3: #{depthwise_separable_conv.1} parent=1 // loop_header
      %s17 = sphi 0, %s21
      %p18 = scmp.ge.s32.totalorder %s17, 6
      %s24 = sphi 0, %s36
      %s25 = sphi 0, %s32
      %s26 = sphi 0, %s24
      %s27 = sphi 0, %s25
      %s28 = sphi 0, %s26
      %s29 = sphi 0, %s27
      %s41 = sphi 0, %s43
      %s44 = sphi 0, %s41
      %s45 = sphi 0, %s44
      %s61 = sphi 0, %s45
      %s67 = sphi 0, %s69
      %s70 = sphi 0, %s67
      %s71 = sphi 0, %s70
      %s87 = sphi 0, %s71
      %s91 = sphi 0, %s91
      %s93 = sphi 0, %s91
      %s94 = sphi 0, %s93
      %s108 = sphi 0, %s94
      %s114 = sphi 0, %s116
      %s117 = sphi 0, %s114
      %s118 = sphi 0, %s117
      %s134 = sphi 0, %s118
      %s138 = sphi 0, %s138
      %s140 = sphi 0, %s138
      %s141 = sphi 0, %s140
      %s155 = sphi 0, %s141
      %s159 = sphi 0, %s159
      %s161 = sphi 0, %s159
      %s162 = sphi 0, %s161
      %s176 = sphi 0, %s162
      %s182 = sphi 0, %s184
      %s185 = sphi 0, %s182
      %s186 = sphi 0, %s185
      %s202 = sphi 0, %s186
    $region4: #{depthwise_separable_conv.1} parent=1 // loop_header_branch
      %20 = sbr.rel (%p18) target = $region8
    $region5: #{depthwise_separable_conv.1} parent=1 // loop_body
      %s22 = ssub.s32 %s17, 1
      %s23 = ssub.s32 %s17, 2
      %s30 = sadd.s32 1, %s25
      %p31 = scmp.ge.s32.totalorder %s30, 2
      %s32 = scalar_select %p31, 0, %s30
      %s33 = sadd.s32 1, %s24
      %s34 = scalar_select %p31, %s33, %s24
      %p35 = scmp.ge.s32.totalorder %s34, 2
      %s36 = scalar_select %p35, 0, %s34
      %s37 = ssub.s32 %s24, %s36
      %s38 = ssub.s32 %s25, %s32
      %s39 = sor.u32 %s37, %s38
      %p40 = scmp.eq.s32.totalorder %s39, 0
      %s42 = sadd.s32 %s41, 1
      %s43 = scalar_select %p40, %s41, %s42
      %p46 = pneg %p40
      %p47 = scmp.eq.s32.totalorder %s17, 3
      %p48 = por %p46, %p47
      %p49 = scmp.ne.s32.totalorder %s41, %s44
      %p50 = scmp.eq.s32.totalorder %s17, 0
      %p51 = por %p49, %p50
      %p52 = scmp.ne.s32.totalorder %s41, %s44
      %p53 = scmp.eq.s32.totalorder %s22, 3
      %p54 = por %p52, %p53
      %p55 = scmp.ne.s32.totalorder %s44, %s45
      %p56 = scmp.eq.s32.totalorder %s22, 0
      %p57 = por %p55, %p56
      %p58 = scmp.ne.s32.totalorder %s44, %s45
      %p59 = scmp.eq.s32.totalorder %s23, 3
      %p60 = por %p58, %p59
      %p62 = scmp.ne.s32.totalorder %s45, %s61
      %p63 = scmp.eq.s32.totalorder %s23, 0
      %p64 = por %p62, %p63
      %s65 = ssub.s32 %s25, %s32
      %p66 = scmp.eq.s32.totalorder %s65, 0
      %s68 = sadd.s32 %s67, 1
      %s69 = scalar_select %p66, %s67, %s68
      %p72 = pneg %p66
      %p73 = scmp.eq.s32.totalorder %s17, 3
      %p74 = por %p72, %p73
      %p75 = scmp.ne.s32.totalorder %s67, %s70
      %p76 = scmp.eq.s32.totalorder %s17, 0
      %p77 = por %p75, %p76
      %p78 = scmp.ne.s32.totalorder %s67, %s70
      %p79 = scmp.eq.s32.totalorder %s22, 3
      %p80 = por %p78, %p79
      %p81 = scmp.ne.s32.totalorder %s70, %s71
      %p82 = scmp.eq.s32.totalorder %s22, 0
      %p83 = por %p81, %p82
      %p84 = scmp.ne.s32.totalorder %s70, %s71
      %p85 = scmp.eq.s32.totalorder %s23, 3
      %p86 = por %p84, %p85
      %p88 = scmp.ne.s32.totalorder %s71, %s87
      %p89 = scmp.eq.s32.totalorder %s23, 0
      %p90 = por %p88, %p89
      %s92 = sadd.s32 %s91, 1
      %p95 = scmp.eq.s32.totalorder %s17, 3
      %p96 = scmp.ne.s32.totalorder %s91, %s93
      %p97 = scmp.eq.s32.totalorder %s17, 0
      %p98 = por %p96, %p97
      %p99 = scmp.ne.s32.totalorder %s91, %s93
      %p100 = scmp.eq.s32.totalorder %s22, 3
      %p101 = por %p99, %p100
      %p102 = scmp.ne.s32.totalorder %s93, %s94
      %p103 = scmp.eq.s32.totalorder %s22, 0
      %p104 = por %p102, %p103
      %p105 = scmp.ne.s32.totalorder %s93, %s94
      %p106 = scmp.eq.s32.totalorder %s23, 3
      %p107 = por %p105, %p106
      %p109 = scmp.ne.s32.totalorder %s94, %s108
      %p110 = scmp.eq.s32.totalorder %s23, 0
      %p111 = por %p109, %p110
      %s112 = ssub.s32 %s25, %s32
      %p113 = scmp.eq.s32.totalorder %s112, 0
      %s115 = sadd.s32 %s114, 1
      %s116 = scalar_select %p113, %s114, %s115
      %p119 = pneg %p113
      %p120 = scmp.eq.s32.totalorder %s17, 3
      %p121 = por %p119, %p120
      %p122 = scmp.ne.s32.totalorder %s114, %s117
      %p123 = scmp.eq.s32.totalorder %s17, 0
      %p124 = por %p122, %p123
      %p125 = scmp.ne.s32.totalorder %s114, %s117
      %p126 = scmp.eq.s32.totalorder %s22, 3
      %p127 = por %p125, %p126
      %p128 = scmp.ne.s32.totalorder %s117, %s118
      %p129 = scmp.eq.s32.totalorder %s22, 0
      %p130 = por %p128, %p129
      %p131 = scmp.ne.s32.totalorder %s117, %s118
      %p132 = scmp.eq.s32.totalorder %s23, 3
      %p133 = por %p131, %p132
      %p135 = scmp.ne.s32.totalorder %s118, %s134
      %p136 = scmp.eq.s32.totalorder %s23, 0
      %p137 = por %p135, %p136
      %s139 = sadd.s32 %s138, 1
      %p142 = scmp.eq.s32.totalorder %s17, 3
      %p143 = scmp.ne.s32.totalorder %s138, %s140
      %p144 = scmp.eq.s32.totalorder %s17, 0
      %p145 = por %p143, %p144
      %p146 = scmp.ne.s32.totalorder %s138, %s140
      %p147 = scmp.eq.s32.totalorder %s22, 3
      %p148 = por %p146, %p147
      %p149 = scmp.ne.s32.totalorder %s140, %s141
      %p150 = scmp.eq.s32.totalorder %s22, 0
      %p151 = por %p149, %p150
      %p152 = scmp.ne.s32.totalorder %s140, %s141
      %p153 = scmp.eq.s32.totalorder %s23, 3
      %p154 = por %p152, %p153
      %p156 = scmp.ne.s32.totalorder %s141, %s155
      %p157 = scmp.eq.s32.totalorder %s23, 0
      %p158 = por %p156, %p157
      %s160 = sadd.s32 %s159, 1
      %p163 = scmp.eq.s32.totalorder %s17, 3
      %p164 = scmp.ne.s32.totalorder %s159, %s161
      %p165 = scmp.eq.s32.totalorder %s17, 0
      %p166 = por %p164, %p165
      %p167 = scmp.ne.s32.totalorder %s159, %s161
      %p168 = scmp.eq.s32.totalorder %s22, 3
      %p169 = por %p167, %p168
      %p170 = scmp.ne.s32.totalorder %s161, %s162
      %p171 = scmp.eq.s32.totalorder %s22, 0
      %p172 = por %p170, %p171
      %p173 = scmp.ne.s32.totalorder %s161, %s162
      %p174 = scmp.eq.s32.totalorder %s23, 3
      %p175 = por %p173, %p174
      %p177 = scmp.ne.s32.totalorder %s162, %s176
      %p178 = scmp.eq.s32.totalorder %s23, 0
      %p179 = por %p177, %p178
      %s180 = ssub.s32 %s24, %s36
      %p181 = scmp.eq.s32.totalorder %s180, 0
      %s183 = sadd.s32 %s182, 1
      %s184 = scalar_select %p181, %s182, %s183
      %p187 = pneg %p181
      %p188 = scmp.eq.s32.totalorder %s17, 3
      %p189 = por %p187, %p188
      %p190 = scmp.ne.s32.totalorder %s182, %s185
      %p191 = scmp.eq.s32.totalorder %s17, 0
      %p192 = por %p190, %p191
      %p193 = scmp.ne.s32.totalorder %s182, %s185
      %p194 = scmp.eq.s32.totalorder %s22, 3
      %p195 = por %p193, %p194
      %p196 = scmp.ne.s32.totalorder %s185, %s186
      %p197 = scmp.eq.s32.totalorder %s22, 0
      %p198 = por %p196, %p197
      %p199 = scmp.ne.s32.totalorder %s185, %s186
      %p200 = scmp.eq.s32.totalorder %s23, 3
      %p201 = por %p199, %p200
      %p203 = scmp.ne.s32.totalorder %s186, %s202
      %p204 = scmp.eq.s32.totalorder %s23, 0
      %p205 = por %p203, %p204
      %p206 = scmp.le.s32.totalorder 1, %s17
      %p207 = scmp.lt.s32.totalorder %s17, 5
      %p208 = pnand %p206, %p207
      %p209 = pneg %p208
      // Predicated region
      $region9: #{depthwise_separable_conv.1} parent=5 // pred_check
        _
      $region10: #{depthwise_separable_conv.1} parent=5 // pred_check_branch
        %211 = sbr.rel (%p208) target = $region12
      $region11: #{depthwise_separable_conv.1} parent=5 // pred_region
        %s212 = ssub.s32 %s17, 1
        // Predicated region
        $region13: #{depthwise_separable_conv.1} parent=11 // pred_check
          %p213 = pneg %p104
        $region14: #{depthwise_separable_conv.1} parent=11 // pred_check_branch
          %215 = sbr.rel (%p213) target = $region16
        $region15: #{depthwise_separable_conv.1} parent=11 // pred_region
          _
        $region16: #{depthwise_separable_conv.1} parent=11 // pred_fallthru
          _
        // Predicated region
        $region17: #{depthwise_separable_conv.1} parent=11 // pred_check
          %p216 = pneg %p151
        $region18: #{depthwise_separable_conv.1} parent=11 // pred_check_branch
          %218 = sbr.rel (%p216) target = $region20
        $region19: #{depthwise_separable_conv.1} parent=11 // pred_region
          _
        $region20: #{depthwise_separable_conv.1} parent=11 // pred_fallthru
          _
        // Predicated region
        $region21: #{depthwise_separable_conv.1} parent=11 // pred_check
          %p219 = pneg %p172
        $region22: #{depthwise_separable_conv.1} parent=11 // pred_check_branch
          %221 = sbr.rel (%p219) target = $region24
        $region23: #{depthwise_separable_conv.1} parent=11 // pred_region
          _
        $region24: #{depthwise_separable_conv.1} parent=11 // pred_fallthru
          _
      $region12: #{depthwise_separable_conv.1} parent=5 // pred_fallthru
        _
      %p222 = scmp.lt.s32.totalorder %s17, 4
      // Predicated region
      $region25: #{depthwise_separable_conv.1} parent=5 // pred_check
        %p223 = pneg %p222
      $region26: #{depthwise_separable_conv.1} parent=5 // pred_check_branch
        %225 = sbr.rel (%p223) target = $region28
      $region27: #{depthwise_separable_conv.1} parent=5 // pred_region
        // Predicated region
        $region29: #{depthwise_separable_conv.1} parent=27 // pred_check
          %p226 = pneg %p51
        $region30: #{depthwise_separable_conv.1} parent=27 // pred_check_branch
          %228 = sbr.rel (%p226) target = $region32
        $region31: #{depthwise_separable_conv.1} parent=27 // pred_region
          %s229 = smul.u32 16, %s25
          %p230 = scmp.lt.s32.totalorder %s24, 1
          %s231 = scalar_select %p230, %s24, 1
          %p232 = scmp.lt.s32.totalorder %s229, 31
          %s233 = scalar_select %p232, %s229, 31
          %s234 = smul.addr %s233, 3
          %s235 = smul.addr %s231, 96
          %s236 = sadd.s32 %s234, %s235
          %s237 = smul.addr %s236, 8
          %s238 = scalar_lea.vmem %s0, %s237
          %s239 = smul.u32 16, %s25
        $region32: #{depthwise_separable_conv.1} parent=27 // pred_fallthru
          _
        // Predicated region
        $region33: #{depthwise_separable_conv.1} parent=27 // pred_check
          %p240 = pneg %p77
        $region34: #{depthwise_separable_conv.1} parent=27 // pred_check_branch
          %242 = sbr.rel (%p240) target = $region36
        $region35: #{depthwise_separable_conv.1} parent=27 // pred_region
          %s243 = smul.u32 16, %s25
          %p244 = scmp.lt.s32.totalorder %s243, 31
          %s245 = scalar_select %p244, %s243, 31
          %s246 = smul.addr %s245, 8
          %s247 = scalar_lea.vmem %s1, %s246
          %s248 = smul.u32 16, %s25
        $region36: #{depthwise_separable_conv.1} parent=27 // pred_fallthru
          _
        // Predicated region
        $region37: #{depthwise_separable_conv.1} parent=27 // pred_check
          %p249 = pneg %p124
        $region38: #{depthwise_separable_conv.1} parent=27 // pred_check_branch
          %251 = sbr.rel (%p249) target = $region40
        $region39: #{depthwise_separable_conv.1} parent=27 // pred_region
          %s252 = sand.u32 %s114, 1
          %s253 = sand.u32 %s114, 1
          %s254 = smul.addr %s253, 128
          %s255 = scalar_lea.vmem [#allocation6], %s254
          %s256 = smul.addr %s25, 8
          %s257 = scalar_lea.vmem %s3, %s256
          // Predicated region
          $region41: #{depthwise_separable_conv.1} parent=39 // pred_check
            _
          $region42: #{depthwise_separable_conv.1} parent=39 // pred_check_branch
            %259 = sbr.rel (0) target = $region44
          $region43: #{depthwise_separable_conv.1} parent=39 // pred_region
            // Predicated region
            $region45: #{depthwise_separable_conv.1} parent=43 // pred_check
              _
            $region46: #{depthwise_separable_conv.1} parent=43 // pred_check_branch
              %261 = sbr.rel (0) target = $region48
            $region47: #{depthwise_separable_conv.1} parent=43 // pred_region
              // Predicated region
              $region60: #{depthwise_separable_conv.1} parent=47 // pred_check
                _
              $region61: #{depthwise_separable_conv.1} parent=47 // pred_check_branch
                %307 = sbr.rel (0) target = $region63
              $region62: #{depthwise_separable_conv.1} parent=47 // pred_region
                loop: start=0, step=1, limit=1
                $region64: #{depthwise_separable_conv.1} parent=62 // loop_pre_header
                  _
                $region65: #{depthwise_separable_conv.1} parent=62 // loop_header
                  %s309 = sphi 0, %s313
                  %p310 = scmp.ge.s32.totalorder %s309, 1
                  %s314 = sphi %s257, %s257
                  %s315 = sphi %s255, %s255
                $region66: #{depthwise_separable_conv.1} parent=62 // loop_header_branch
                  %312 = sbr.rel (%p310) target = $region70
                $region67: #{depthwise_separable_conv.1} parent=62 // loop_body
                  %v316 = vld [vmem:[%s314] sm:$0xff]
                  %317 = vst [vmem:[%s315] sm:$0xff] %v316
                  %v318 = vld [vmem:[%s314 + $0x10] sm:$0xff]
                  %319 = vst [vmem:[%s315 + $0x8] sm:$0xff] %v318
                  %v320 = vld [vmem:[%s314 + $0x20] sm:$0xff]
                  %321 = vst [vmem:[%s315 + $0x10] sm:$0xff] %v320
                  %v322 = vld [vmem:[%s314 + $0x30] sm:$0xff]
                  %323 = vst [vmem:[%s315 + $0x18] sm:$0xff] %v322
                  %v324 = vld [vmem:[%s314 + $0x40] sm:$0xff]
                  %325 = vst [vmem:[%s315 + $0x20] sm:$0xff] %v324
                  %v326 = vld [vmem:[%s314 + $0x50] sm:$0xff]
                  %327 = vst [vmem:[%s315 + $0x28] sm:$0xff] %v326
                  %v328 = vld [vmem:[%s314 + $0x60] sm:$0xff]
                  %329 = vst [vmem:[%s315 + $0x30] sm:$0xff] %v328
                  %v330 = vld [vmem:[%s314 + $0x70] sm:$0xff]
                  %331 = vst [vmem:[%s315 + $0x38] sm:$0xff] %v330
                  %v332 = vld [vmem:[%s314 + $0x80] sm:$0xff]
                  %333 = vst [vmem:[%s315 + $0x40] sm:$0xff] %v332
                  %v334 = vld [vmem:[%s314 + $0x90] sm:$0xff]
                  %335 = vst [vmem:[%s315 + $0x48] sm:$0xff] %v334
                  %v336 = vld [vmem:[%s314 + $0xa0] sm:$0xff]
                  %337 = vst [vmem:[%s315 + $0x50] sm:$0xff] %v336
                  %v338 = vld [vmem:[%s314 + $0xb0] sm:$0xff]
                  %339 = vst [vmem:[%s315 + $0x58] sm:$0xff] %v338
                  %v340 = vld [vmem:[%s314 + $0xc0] sm:$0xff]
                  %341 = vst [vmem:[%s315 + $0x60] sm:$0xff] %v340
                  %v342 = vld [vmem:[%s314 + $0xd0] sm:$0xff]
                  %343 = vst [vmem:[%s315 + $0x68] sm:$0xff] %v342
                  %v344 = vld [vmem:[%s314 + $0xe0] sm:$0xff]
                  %345 = vst [vmem:[%s315 + $0x70] sm:$0xff] %v344
                  %v346 = vld [vmem:[%s314 + $0xf0] sm:$0xff]
                  %347 = vst [vmem:[%s315 + $0x78] sm:$0xff] %v346
                $region68: #{depthwise_separable_conv.1} parent=62 // loop_footer
                  %s313 = sadd.s32 1, %s309
                $region69: #{depthwise_separable_conv.1} parent=62 // loop_footer_branch
                  %308 = sbr.rel target = $region65
                $region70: #{depthwise_separable_conv.1} parent=62 // loop_exit
                  _
              $region63: #{depthwise_separable_conv.1} parent=47 // pred_fallthru
                _
              // Predicated region
              $region71: #{depthwise_separable_conv.1} parent=47 // pred_check
                _
              $region72: #{depthwise_separable_conv.1} parent=47 // pred_check_branch
                %349 = sbr.rel target = $region74
              $region73: #{depthwise_separable_conv.1} parent=47 // pred_region
                _
              $region74: #{depthwise_separable_conv.1} parent=47 // pred_fallthru
                _
            $region48: #{depthwise_separable_conv.1} parent=43 // pred_fallthru
              _
            // Predicated region
            $region49: #{depthwise_separable_conv.1} parent=43 // pred_check
              _
            $region50: #{depthwise_separable_conv.1} parent=43 // pred_check_branch
              %263 = sbr.rel target = $region52
            $region51: #{depthwise_separable_conv.1} parent=43 // pred_region
              %s265 = ssub.s32 256, 1
              loop: start=0, step=1, limit=1
              $region53: #{depthwise_separable_conv.1} parent=51 // loop_pre_header
                _
              $region54: #{depthwise_separable_conv.1} parent=51 // loop_header
                %s267 = sphi 0, %s271
                %p268 = scmp.ge.s32.totalorder %s267, 1
                %s272 = sphi %s257, %s257
                %s273 = sphi %s255, %s255
              $region55: #{depthwise_separable_conv.1} parent=51 // loop_header_branch
                %270 = sbr.rel (%p268) target = $region59
              $region56: #{depthwise_separable_conv.1} parent=51 // loop_body
                %v274 = vld [vmem:[%s272] sm:%s265]
                %275 = vst [vmem:[%s273] sm:%s265] %v274
                %v276 = vld [vmem:[%s272 + $0x10] sm:%s265]
                %277 = vst [vmem:[%s273 + $0x8] sm:%s265] %v276
                %v278 = vld [vmem:[%s272 + $0x20] sm:%s265]
                %279 = vst [vmem:[%s273 + $0x10] sm:%s265] %v278
                %v280 = vld [vmem:[%s272 + $0x30] sm:%s265]
                %281 = vst [vmem:[%s273 + $0x18] sm:%s265] %v280
                %v282 = vld [vmem:[%s272 + $0x40] sm:%s265]
                %283 = vst [vmem:[%s273 + $0x20] sm:%s265] %v282
                %v284 = vld [vmem:[%s272 + $0x50] sm:%s265]
                %285 = vst [vmem:[%s273 + $0x28] sm:%s265] %v284
                %v286 = vld [vmem:[%s272 + $0x60] sm:%s265]
                %287 = vst [vmem:[%s273 + $0x30] sm:%s265] %v286
                %v288 = vld [vmem:[%s272 + $0x70] sm:%s265]
                %289 = vst [vmem:[%s273 + $0x38] sm:%s265] %v288
                %v290 = vld [vmem:[%s272 + $0x80] sm:%s265]
                %291 = vst [vmem:[%s273 + $0x40] sm:%s265] %v290
                %v292 = vld [vmem:[%s272 + $0x90] sm:%s265]
                %293 = vst [vmem:[%s273 + $0x48] sm:%s265] %v292
                %v294 = vld [vmem:[%s272 + $0xa0] sm:%s265]
                %295 = vst [vmem:[%s273 + $0x50] sm:%s265] %v294
                %v296 = vld [vmem:[%s272 + $0xb0] sm:%s265]
                %297 = vst [vmem:[%s273 + $0x58] sm:%s265] %v296
                %v298 = vld [vmem:[%s272 + $0xc0] sm:%s265]
                %299 = vst [vmem:[%s273 + $0x60] sm:%s265] %v298
                %v300 = vld [vmem:[%s272 + $0xd0] sm:%s265]
                %301 = vst [vmem:[%s273 + $0x68] sm:%s265] %v300
                %v302 = vld [vmem:[%s272 + $0xe0] sm:%s265]
                %303 = vst [vmem:[%s273 + $0x70] sm:%s265] %v302
                %v304 = vld [vmem:[%s272 + $0xf0] sm:%s265]
                %305 = vst [vmem:[%s273 + $0x78] sm:%s265] %v304
              $region57: #{depthwise_separable_conv.1} parent=51 // loop_footer
                %s271 = sadd.s32 1, %s267
              $region58: #{depthwise_separable_conv.1} parent=51 // loop_footer_branch
                %266 = sbr.rel target = $region54
              $region59: #{depthwise_separable_conv.1} parent=51 // loop_exit
                _
            $region52: #{depthwise_separable_conv.1} parent=43 // pred_fallthru
              _
          $region44: #{depthwise_separable_conv.1} parent=39 // pred_fallthru
            _
          %350 = vnop
        $region40: #{depthwise_separable_conv.1} parent=27 // pred_fallthru
          _
      $region28: #{depthwise_separable_conv.1} parent=5 // pred_fallthru
        _
      %p351 = scmp.le.s32.totalorder 1, %s17
      %p352 = scmp.lt.s32.totalorder %s17, 5
      %p353 = pnand %p351, %p352
      %p354 = pneg %p353
      // Predicated region
      $region75: #{depthwise_separable_conv.1} parent=5 // pred_check
        _
      $region76: #{depthwise_separable_conv.1} parent=5 // pred_check_branch
        %356 = sbr.rel (%p353) target = $region78
      $region77: #{depthwise_separable_conv.1} parent=5 // pred_region
        %s357 = ssub.s32 %s17, 1
        %s358 = sand.u32 %s117, 1
        %s359 = sand.u32 %s117, 1
        %s360 = smul.addr %s359, 128
        %s361 = scalar_lea.vmem [#allocation6], %s360
        // Predicated region
        $region79: #{depthwise_separable_conv.1} parent=77 // pred_check
          %p362 = pneg %p130
        $region80: #{depthwise_separable_conv.1} parent=77 // pred_check_branch
          %364 = sbr.rel (%p362) target = $region82
        $region81: #{depthwise_separable_conv.1} parent=77 // pred_region
          _
        $region82: #{depthwise_separable_conv.1} parent=77 // pred_fallthru
          _
        %s365 = smul.u32 16, %s27
        %p366 = scmp.lt.s32.totalorder %s26, 1
        %s367 = scalar_select %p366, %s26, 1
        %p368 = scmp.lt.s32.totalorder %s365, 31
        %s369 = scalar_select %p368, %s365, 31
        %s370 = smul.addr %s369, 3
        %s371 = smul.addr %s367, 96
        %s372 = sadd.s32 %s370, %s371
        %s373 = smul.addr %s372, 8
        %s374 = scalar_lea.vmem %s0, %s373
        %p375 = pneg %p57
        %p376 = pneg %p54
        %s377 = smul.u32 16, %s27
        %p378 = scmp.lt.s32.totalorder %s377, 31
        %s379 = scalar_select %p378, %s377, 31
        %s380 = smul.addr %s379, 8
        %s381 = scalar_lea.vmem %s1, %s380
        %p382 = pneg %p83
        %p383 = pneg %p80
        %p384 = pneg %p104
        %p385 = pneg %p101
        %s386 = sand.u32 %s117, 1
        %s387 = sand.u32 %s117, 1
        %s388 = smul.addr %s387, 128
        %s389 = scalar_lea.vmem [#allocation6], %s388
        %p390 = pneg %p130
        %p391 = pneg %p127
        %p392 = pneg %p151
        %p393 = pneg %p148
        %p394 = pneg %p172
        %p395 = pneg %p169
        %p396 = pneg %p198
        %p397 = pneg %p195
        %s398 = sand.u32 %s185, 1
        %s399 = scalar_lea.sflag [#allocation8], %s398
        %s400 = sand.u32 %s185, 1
        %s401 = smul.addr %s400, 256
        %s402 = scalar_lea.vmem [#allocation7], %s401
        %s403 = smul.u32 16, %s27
        %p404 = scmp.lt.s32.totalorder %s26, 1
        %s405 = scalar_select %p404, %s26, 1
        %p406 = scmp.lt.s32.totalorder %s403, 31
        %s407 = scalar_select %p406, %s403, 31
        %s408 = smul.addr %s407, 3
        %s409 = smul.addr %s405, 96
        %s410 = sadd.s32 %s408, %s409
        %s411 = smul.addr %s410, 8
        %s412 = scalar_lea.vmem %s0, %s411
        %s413 = smul.u32 16, %s27
        %s414 = smul.u32 16, %s27
        %p415 = scmp.lt.s32.totalorder %s414, 31
        %s416 = scalar_select %p415, %s414, 31
        %s417 = smul.addr %s416, 8
        %s418 = scalar_lea.vmem %s1, %s417
        %s419 = smul.u32 16, %s27
        %v420 = vld [vmem:[%s418] sm:$0xff]
        %v421 = vld [vmem:[%s418 + $0x8] sm:$0xff]
        %v422 = vld [vmem:[%s418 + $0x10] sm:$0xff]
        %v423 = vld [vmem:[%s418 + $0x18] sm:$0xff]
        %v424 = vld [vmem:[%s418 + $0x20] sm:$0xff]
        %v425 = vld [vmem:[%s418 + $0x28] sm:$0xff]
        %v426 = vld [vmem:[%s418 + $0x30] sm:$0xff]
        %v427 = vld [vmem:[%s418 + $0x38] sm:$0xff]
        %v428 = vld [vmem:[%s418 + $0x40] sm:$0xff]
        %v429 = vld [vmem:[%s418 + $0x48] sm:$0xff]
        %v430 = vld [vmem:[%s418 + $0x50] sm:$0xff]
        %v431 = vld [vmem:[%s418 + $0x58] sm:$0xff]
        %v432 = vld [vmem:[%s418 + $0x60] sm:$0xff]
        %v433 = vld [vmem:[%s418 + $0x68] sm:$0xff]
        %v434 = vld [vmem:[%s418 + $0x70] sm:$0xff]
        %v435 = vld [vmem:[%s418 + $0x78] sm:$0xff]
        %v436 = vld [vmem:[%s412] sm:$0xff]
        %v437 = vld [vmem:[%s412 + $0x8] sm:$0xff]
        %v438 = vld [vmem:[%s412 + $0x18] sm:$0xff]
        %v439 = vld [vmem:[%s412 + $0x20] sm:$0xff]
        %v440 = vld [vmem:[%s412 + $0x30] sm:$0xff]
        %v441 = vld [vmem:[%s412 + $0x38] sm:$0xff]
        %v442 = vld [vmem:[%s412 + $0x48] sm:$0xff]
        %v443 = vld [vmem:[%s412 + $0x50] sm:$0xff]
        %v444 = vld [vmem:[%s412 + $0x60] sm:$0xff]
        %v445 = vld [vmem:[%s412 + $0x68] sm:$0xff]
        %v446 = vld [vmem:[%s412 + $0x78] sm:$0xff]
        %v447 = vld [vmem:[%s412 + $0x80] sm:$0xff]
        %v448 = vld [vmem:[%s412 + $0x90] sm:$0xff]
        %v449 = vld [vmem:[%s412 + $0x98] sm:$0xff]
        %v450 = vld [vmem:[%s412 + $0xa8] sm:$0xff]
        %v451 = vld [vmem:[%s412 + $0xb0] sm:$0xff]
        %v452 = vld [vmem:[%s412 + $0xc0] sm:$0xff]
        %v453 = vld [vmem:[%s412 + $0xc8] sm:$0xff]
        %v454 = vld [vmem:[%s412 + $0xd8] sm:$0xff]
        %v455 = vld [vmem:[%s412 + $0xe0] sm:$0xff]
        %v456 = vld [vmem:[%s412 + $0xf0] sm:$0xff]
        %v457 = vld [vmem:[%s412 + $0xf8] sm:$0xff]
        %v458 = vld [vmem:[%s412 + $0x108] sm:$0xff]
        %v459 = vld [vmem:[%s412 + $0x110] sm:$0xff]
        %v460 = vld [vmem:[%s412 + $0x120] sm:$0xff]
        %v461 = vld [vmem:[%s412 + $0x128] sm:$0xff]
        %v462 = vld [vmem:[%s412 + $0x138] sm:$0xff]
        %v463 = vld [vmem:[%s412 + $0x140] sm:$0xff]
        %v464 = vld [vmem:[%s412 + $0x150] sm:$0xff]
        %v465 = vld [vmem:[%s412 + $0x158] sm:$0xff]
        %v466 = vld [vmem:[%s412 + $0x168] sm:$0xff]
        %v467 = vld [vmem:[%s412 + $0x170] sm:$0xff]
        %469 = vset.pattern.permute.xlu0 0
        %470 = vperm.xlu0 %469, %v420
        %v471 = vpop.permute.xlu0 %470
        %474 = vset.pattern.permute.xlu0 0
        %475 = vperm.xlu0 %474, %v421
        %v476 = vpop.permute.xlu0 %475
        %479 = vset.pattern.permute.xlu0 0
        %480 = vperm.xlu0 %479, %v422
        %v481 = vpop.permute.xlu0 %480
        %484 = vset.pattern.permute.xlu0 0
        %485 = vperm.xlu0 %484, %v423
        %v486 = vpop.permute.xlu0 %485
        %489 = vset.pattern.permute.xlu0 0
        %490 = vperm.xlu0 %489, %v424
        %v491 = vpop.permute.xlu0 %490
        %494 = vset.pattern.permute.xlu0 0
        %495 = vperm.xlu0 %494, %v425
        %v496 = vpop.permute.xlu0 %495
        %499 = vset.pattern.permute.xlu0 0
        %500 = vperm.xlu0 %499, %v426
        %v501 = vpop.permute.xlu0 %500
        %504 = vset.pattern.permute.xlu0 0
        %505 = vperm.xlu0 %504, %v427
        %v506 = vpop.permute.xlu0 %505
        %509 = vset.pattern.permute.xlu0 0
        %510 = vperm.xlu0 %509, %v428
        %v511 = vpop.permute.xlu0 %510
        %514 = vset.pattern.permute.xlu0 0
        %515 = vperm.xlu0 %514, %v429
        %v516 = vpop.permute.xlu0 %515
        %519 = vset.pattern.permute.xlu0 0
        %520 = vperm.xlu0 %519, %v430
        %v521 = vpop.permute.xlu0 %520
        %524 = vset.pattern.permute.xlu0 0
        %525 = vperm.xlu0 %524, %v431
        %v526 = vpop.permute.xlu0 %525
        %529 = vset.pattern.permute.xlu0 0
        %530 = vperm.xlu0 %529, %v432
        %v531 = vpop.permute.xlu0 %530
        %534 = vset.pattern.permute.xlu0 0
        %535 = vperm.xlu0 %534, %v433
        %v536 = vpop.permute.xlu0 %535
        %539 = vset.pattern.permute.xlu0 0
        %540 = vperm.xlu0 %539, %v434
        %v541 = vpop.permute.xlu0 %540
        %544 = vset.pattern.permute.xlu0 0
        %545 = vperm.xlu0 %544, %v435
        %v546 = vpop.permute.xlu0 %545
        %v548 = vmul.f32 %v471, %v436
        %v549 = vmul.f32 %v471, %v437
        %v550 = vmul.f32 %v476, %v438
        %v551 = vmul.f32 %v476, %v439
        %v552 = vmul.f32 %v481, %v440
        %v553 = vmul.f32 %v481, %v441
        %v554 = vmul.f32 %v486, %v442
        %v555 = vmul.f32 %v486, %v443
        %v556 = vmul.f32 %v491, %v444
        %v557 = vmul.f32 %v491, %v445
        %v558 = vmul.f32 %v496, %v446
        %v559 = vmul.f32 %v496, %v447
        %v560 = vmul.f32 %v501, %v448
        %v561 = vmul.f32 %v501, %v449
        %v562 = vmul.f32 %v506, %v450
        %v563 = vmul.f32 %v506, %v451
        %v564 = vmul.f32 %v511, %v452
        %v565 = vmul.f32 %v511, %v453
        %v566 = vmul.f32 %v516, %v454
        %v567 = vmul.f32 %v516, %v455
        %v568 = vmul.f32 %v521, %v456
        %v569 = vmul.f32 %v521, %v457
        %v570 = vmul.f32 %v526, %v458
        %v571 = vmul.f32 %v526, %v459
        %v572 = vmul.f32 %v531, %v460
        %v573 = vmul.f32 %v531, %v461
        %v574 = vmul.f32 %v536, %v462
        %v575 = vmul.f32 %v536, %v463
        %v576 = vmul.f32 %v541, %v464
        %v577 = vmul.f32 %v541, %v465
        %v578 = vmul.f32 %v546, %v466
        %v579 = vmul.f32 %v546, %v467
        %v580 = vld [vmem:[%s412] sm:$0xff]
        %v581 = vld [vmem:[%s412 + $0x8] sm:$0xff]
        %v582 = vld [vmem:[%s412 + $0x10] sm:$0xff]
        %v583 = vld [vmem:[%s412 + $0x18] sm:$0xff]
        %v584 = vld [vmem:[%s412 + $0x20] sm:$0xff]
        %v585 = vld [vmem:[%s412 + $0x28] sm:$0xff]
        %v586 = vld [vmem:[%s412 + $0x30] sm:$0xff]
        %v587 = vld [vmem:[%s412 + $0x38] sm:$0xff]
        %v588 = vld [vmem:[%s412 + $0x40] sm:$0xff]
        %v589 = vld [vmem:[%s412 + $0x48] sm:$0xff]
        %v590 = vld [vmem:[%s412 + $0x50] sm:$0xff]
        %v591 = vld [vmem:[%s412 + $0x58] sm:$0xff]
        %v592 = vld [vmem:[%s412 + $0x60] sm:$0xff]
        %v593 = vld [vmem:[%s412 + $0x68] sm:$0xff]
        %v594 = vld [vmem:[%s412 + $0x70] sm:$0xff]
        %v595 = vld [vmem:[%s412 + $0x78] sm:$0xff]
        %v596 = vld [vmem:[%s412 + $0x80] sm:$0xff]
        %v597 = vld [vmem:[%s412 + $0x88] sm:$0xff]
        %v598 = vld [vmem:[%s412 + $0x90] sm:$0xff]
        %v599 = vld [vmem:[%s412 + $0x98] sm:$0xff]
        %v600 = vld [vmem:[%s412 + $0xa0] sm:$0xff]
        %v601 = vld [vmem:[%s412 + $0xa8] sm:$0xff]
        %v602 = vld [vmem:[%s412 + $0xb0] sm:$0xff]
        %v603 = vld [vmem:[%s412 + $0xb8] sm:$0xff]
        %v604 = vld [vmem:[%s412 + $0xc0] sm:$0xff]
        %v605 = vld [vmem:[%s412 + $0xc8] sm:$0xff]
        %v606 = vld [vmem:[%s412 + $0xd0] sm:$0xff]
        %v607 = vld [vmem:[%s412 + $0xd8] sm:$0xff]
        %v608 = vld [vmem:[%s412 + $0xe0] sm:$0xff]
        %v609 = vld [vmem:[%s412 + $0xe8] sm:$0xff]
        %v610 = vld [vmem:[%s412 + $0xf0] sm:$0xff]
        %v611 = vld [vmem:[%s412 + $0xf8] sm:$0xff]
        %v612 = vld [vmem:[%s412 + $0x100] sm:$0xff]
        %v613 = vld [vmem:[%s412 + $0x108] sm:$0xff]
        %v614 = vld [vmem:[%s412 + $0x110] sm:$0xff]
        %v615 = vld [vmem:[%s412 + $0x118] sm:$0xff]
        %v616 = vld [vmem:[%s412 + $0x120] sm:$0xff]
        %v617 = vld [vmem:[%s412 + $0x128] sm:$0xff]
        %v618 = vld [vmem:[%s412 + $0x130] sm:$0xff]
        %v619 = vld [vmem:[%s412 + $0x138] sm:$0xff]
        %v620 = vld [vmem:[%s412 + $0x140] sm:$0xff]
        %v621 = vld [vmem:[%s412 + $0x148] sm:$0xff]
        %v622 = vld [vmem:[%s412 + $0x150] sm:$0xff]
        %v623 = vld [vmem:[%s412 + $0x158] sm:$0xff]
        %v624 = vld [vmem:[%s412 + $0x160] sm:$0xff]
        %v625 = vld [vmem:[%s412 + $0x168] sm:$0xff]
        %v626 = vld [vmem:[%s412 + $0x170] sm:$0xff]
        %v627 = vld [vmem:[%s412 + $0x178] sm:$0xff]
        %628 = vset.pattern.permute.xlu0 1
        %629 = vperm.xlu0 %628, %v420
        %v630 = vpop.permute.xlu0 %629
        %632 = vset.pattern.permute.xlu0 1
        %633 = vperm.xlu0 %632, %v421
        %v634 = vpop.permute.xlu0 %633
        %636 = vset.pattern.permute.xlu0 1
        %637 = vperm.xlu0 %636, %v422
        %v638 = vpop.permute.xlu0 %637
        %640 = vset.pattern.permute.xlu0 1
        %641 = vperm.xlu0 %640, %v423
        %v642 = vpop.permute.xlu0 %641
        %644 = vset.pattern.permute.xlu0 1
        %645 = vperm.xlu0 %644, %v424
        %v646 = vpop.permute.xlu0 %645
        %648 = vset.pattern.permute.xlu0 1
        %649 = vperm.xlu0 %648, %v425
        %v650 = vpop.permute.xlu0 %649
        %652 = vset.pattern.permute.xlu0 1
        %653 = vperm.xlu0 %652, %v426
        %v654 = vpop.permute.xlu0 %653
        %656 = vset.pattern.permute.xlu0 1
        %657 = vperm.xlu0 %656, %v427
        %v658 = vpop.permute.xlu0 %657
        %660 = vset.pattern.permute.xlu0 1
        %661 = vperm.xlu0 %660, %v428
        %v662 = vpop.permute.xlu0 %661
        %664 = vset.pattern.permute.xlu0 1
        %665 = vperm.xlu0 %664, %v429
        %v666 = vpop.permute.xlu0 %665
        %668 = vset.pattern.permute.xlu0 1
        %669 = vperm.xlu0 %668, %v430
        %v670 = vpop.permute.xlu0 %669
        %672 = vset.pattern.permute.xlu0 1
        %673 = vperm.xlu0 %672, %v431
        %v674 = vpop.permute.xlu0 %673
        %676 = vset.pattern.permute.xlu0 1
        %677 = vperm.xlu0 %676, %v432
        %v678 = vpop.permute.xlu0 %677
        %680 = vset.pattern.permute.xlu0 1
        %681 = vperm.xlu0 %680, %v433
        %v682 = vpop.permute.xlu0 %681
        %684 = vset.pattern.permute.xlu0 1
        %685 = vperm.xlu0 %684, %v434
        %v686 = vpop.permute.xlu0 %685
        %688 = vset.pattern.permute.xlu0 1
        %689 = vperm.xlu0 %688, %v435
        %v690 = vpop.permute.xlu0 %689
        %v692 = vmul.f32 %v630, %v580
        %v693 = vmul.f32 %v630, %v581
        %v694 = vmul.f32 %v630, %v582
        %v695 = vmul.f32 %v634, %v583
        %v696 = vmul.f32 %v634, %v584
        %v697 = vmul.f32 %v634, %v585
        %v698 = vmul.f32 %v638, %v586
        %v699 = vmul.f32 %v638, %v587
        %v700 = vmul.f32 %v638, %v588
        %v701 = vmul.f32 %v642, %v589
        %v702 = vmul.f32 %v642, %v590
        %v703 = vmul.f32 %v642, %v591
        %v704 = vmul.f32 %v646, %v592
        %v705 = vmul.f32 %v646, %v593
        %v706 = vmul.f32 %v646, %v594
        %v707 = vmul.f32 %v650, %v595
        %v708 = vmul.f32 %v650, %v596
        %v709 = vmul.f32 %v650, %v597
        %v710 = vmul.f32 %v654, %v598
        %v711 = vmul.f32 %v654, %v599
        %v712 = vmul.f32 %v654, %v600
        %v713 = vmul.f32 %v658, %v601
        %v714 = vmul.f32 %v658, %v602
        %v715 = vmul.f32 %v658, %v603
        %v716 = vmul.f32 %v662, %v604
        %v717 = vmul.f32 %v662, %v605
        %v718 = vmul.f32 %v662, %v606
        %v719 = vmul.f32 %v666, %v607
        %v720 = vmul.f32 %v666, %v608
        %v721 = vmul.f32 %v666, %v609
        %v722 = vmul.f32 %v670, %v610
        %v723 = vmul.f32 %v670, %v611
        %v724 = vmul.f32 %v670, %v612
        %v725 = vmul.f32 %v674, %v613
        %v726 = vmul.f32 %v674, %v614
        %v727 = vmul.f32 %v674, %v615
        %v728 = vmul.f32 %v678, %v616
        %v729 = vmul.f32 %v678, %v617
        %v730 = vmul.f32 %v678, %v618
        %v731 = vmul.f32 %v682, %v619
        %v732 = vmul.f32 %v682, %v620
        %v733 = vmul.f32 %v682, %v621
        %v734 = vmul.f32 %v686, %v622
        %v735 = vmul.f32 %v686, %v623
        %v736 = vmul.f32 %v686, %v624
        %v737 = vmul.f32 %v690, %v625
        %v738 = vmul.f32 %v690, %v626
        %v739 = vmul.f32 %v690, %v627
        %788 = vrot.lane.b32.xlu0 %v692, 126
        %v789 = vpop.permute.xlu0 %788
        %790 = vrot.lane.b32.xlu0 %v693, 126
        %v791 = vpop.permute.xlu0 %790
        %792 = vrot.lane.b32.xlu0 %v694, 126
        %v793 = vpop.permute.xlu0 %792
        %794 = vrot.lane.b32.xlu0 %v695, 126
        %v795 = vpop.permute.xlu0 %794
        %796 = vrot.lane.b32.xlu0 %v696, 126
        %v797 = vpop.permute.xlu0 %796
        %798 = vrot.lane.b32.xlu0 %v697, 126
        %v799 = vpop.permute.xlu0 %798
        %800 = vrot.lane.b32.xlu0 %v698, 126
        %v801 = vpop.permute.xlu0 %800
        %802 = vrot.lane.b32.xlu0 %v699, 126
        %v803 = vpop.permute.xlu0 %802
        %804 = vrot.lane.b32.xlu0 %v700, 126
        %v805 = vpop.permute.xlu0 %804
        %806 = vrot.lane.b32.xlu0 %v701, 126
        %v807 = vpop.permute.xlu0 %806
        %808 = vrot.lane.b32.xlu0 %v702, 126
        %v809 = vpop.permute.xlu0 %808
        %810 = vrot.lane.b32.xlu0 %v703, 126
        %v811 = vpop.permute.xlu0 %810
        %812 = vrot.lane.b32.xlu0 %v704, 126
        %v813 = vpop.permute.xlu0 %812
        %814 = vrot.lane.b32.xlu0 %v705, 126
        %v815 = vpop.permute.xlu0 %814
        %816 = vrot.lane.b32.xlu0 %v706, 126
        %v817 = vpop.permute.xlu0 %816
        %818 = vrot.lane.b32.xlu0 %v707, 126
        %v819 = vpop.permute.xlu0 %818
        %820 = vrot.lane.b32.xlu0 %v708, 126
        %v821 = vpop.permute.xlu0 %820
        %822 = vrot.lane.b32.xlu0 %v709, 126
        %v823 = vpop.permute.xlu0 %822
        %824 = vrot.lane.b32.xlu0 %v710, 126
        %v825 = vpop.permute.xlu0 %824
        %826 = vrot.lane.b32.xlu0 %v711, 126
        %v827 = vpop.permute.xlu0 %826
        %828 = vrot.lane.b32.xlu0 %v712, 126
        %v829 = vpop.permute.xlu0 %828
        %830 = vrot.lane.b32.xlu0 %v713, 126
        %v831 = vpop.permute.xlu0 %830
        %832 = vrot.lane.b32.xlu0 %v714, 126
        %v833 = vpop.permute.xlu0 %832
        %834 = vrot.lane.b32.xlu0 %v715, 126
        %v835 = vpop.permute.xlu0 %834
        %836 = vrot.lane.b32.xlu0 %v716, 126
        %v837 = vpop.permute.xlu0 %836
        %838 = vrot.lane.b32.xlu0 %v717, 126
        %v839 = vpop.permute.xlu0 %838
        %840 = vrot.lane.b32.xlu0 %v718, 126
        %v841 = vpop.permute.xlu0 %840
        %842 = vrot.lane.b32.xlu0 %v719, 126
        %v843 = vpop.permute.xlu0 %842
        %844 = vrot.lane.b32.xlu0 %v720, 126
        %v845 = vpop.permute.xlu0 %844
        %846 = vrot.lane.b32.xlu0 %v721, 126
        %v847 = vpop.permute.xlu0 %846
        %848 = vrot.lane.b32.xlu0 %v722, 126
        %v849 = vpop.permute.xlu0 %848
        %850 = vrot.lane.b32.xlu0 %v723, 126
        %v851 = vpop.permute.xlu0 %850
        %852 = vrot.lane.b32.xlu0 %v724, 126
        %v853 = vpop.permute.xlu0 %852
        %854 = vrot.lane.b32.xlu0 %v725, 126
        %v855 = vpop.permute.xlu0 %854
        %856 = vrot.lane.b32.xlu0 %v726, 126
        %v857 = vpop.permute.xlu0 %856
        %858 = vrot.lane.b32.xlu0 %v727, 126
        %v859 = vpop.permute.xlu0 %858
        %860 = vrot.lane.b32.xlu0 %v728, 126
        %v861 = vpop.permute.xlu0 %860
        %862 = vrot.lane.b32.xlu0 %v729, 126
        %v863 = vpop.permute.xlu0 %862
        %864 = vrot.lane.b32.xlu0 %v730, 126
        %v865 = vpop.permute.xlu0 %864
        %866 = vrot.lane.b32.xlu0 %v731, 126
        %v867 = vpop.permute.xlu0 %866
        %868 = vrot.lane.b32.xlu0 %v732, 126
        %v869 = vpop.permute.xlu0 %868
        %870 = vrot.lane.b32.xlu0 %v733, 126
        %v871 = vpop.permute.xlu0 %870
        %872 = vrot.lane.b32.xlu0 %v734, 126
        %v873 = vpop.permute.xlu0 %872
        %874 = vrot.lane.b32.xlu0 %v735, 126
        %v875 = vpop.permute.xlu0 %874
        %876 = vrot.lane.b32.xlu0 %v736, 126
        %v877 = vpop.permute.xlu0 %876
        %878 = vrot.lane.b32.xlu0 %v737, 126
        %v879 = vpop.permute.xlu0 %878
        %880 = vrot.lane.b32.xlu0 %v738, 126
        %v881 = vpop.permute.xlu0 %880
        %882 = vrot.lane.b32.xlu0 %v739, 126
        %v883 = vpop.permute.xlu0 %882
        %vm884 = vcmask 1031168
        %v885 = vsel %vm884, %v789, %v791
        %v886 = vsel %vm884, %v791, %v793
        %v887 = vsel %vm884, %v795, %v797
        %v888 = vsel %vm884, %v797, %v799
        %v889 = vsel %vm884, %v801, %v803
        %v890 = vsel %vm884, %v803, %v805
        %v891 = vsel %vm884, %v807, %v809
        %v892 = vsel %vm884, %v809, %v811
        %v893 = vsel %vm884, %v813, %v815
        %v894 = vsel %vm884, %v815, %v817
        %v895 = vsel %vm884, %v819, %v821
        %v896 = vsel %vm884, %v821, %v823
        %v897 = vsel %vm884, %v825, %v827
        %v898 = vsel %vm884, %v827, %v829
        %v899 = vsel %vm884, %v831, %v833
        %v900 = vsel %vm884, %v833, %v835
        %v901 = vsel %vm884, %v837, %v839
        %v902 = vsel %vm884, %v839, %v841
        %v903 = vsel %vm884, %v843, %v845
        %v904 = vsel %vm884, %v845, %v847
        %v905 = vsel %vm884, %v849, %v851
        %v906 = vsel %vm884, %v851, %v853
        %v907 = vsel %vm884, %v855, %v857
        %v908 = vsel %vm884, %v857, %v859
        %v909 = vsel %vm884, %v861, %v863
        %v910 = vsel %vm884, %v863, %v865
        %v911 = vsel %vm884, %v867, %v869
        %v912 = vsel %vm884, %v869, %v871
        %v913 = vsel %vm884, %v873, %v875
        %v914 = vsel %vm884, %v875, %v877
        %v915 = vsel %vm884, %v879, %v881
        %v916 = vsel %vm884, %v881, %v883
        %v949 = vadd.f32 %v548, %v885
        %v950 = vadd.f32 %v549, %v886
        %v951 = vadd.f32 %v550, %v887
        %v952 = vadd.f32 %v551, %v888
        %v953 = vadd.f32 %v552, %v889
        %v954 = vadd.f32 %v553, %v890
        %v955 = vadd.f32 %v554, %v891
        %v956 = vadd.f32 %v555, %v892
        %v957 = vadd.f32 %v556, %v893
        %v958 = vadd.f32 %v557, %v894
        %v959 = vadd.f32 %v558, %v895
        %v960 = vadd.f32 %v559, %v896
        %v961 = vadd.f32 %v560, %v897
        %v962 = vadd.f32 %v561, %v898
        %v963 = vadd.f32 %v562, %v899
        %v964 = vadd.f32 %v563, %v900
        %v965 = vadd.f32 %v564, %v901
        %v966 = vadd.f32 %v565, %v902
        %v967 = vadd.f32 %v566, %v903
        %v968 = vadd.f32 %v567, %v904
        %v969 = vadd.f32 %v568, %v905
        %v970 = vadd.f32 %v569, %v906
        %v971 = vadd.f32 %v570, %v907
        %v972 = vadd.f32 %v571, %v908
        %v973 = vadd.f32 %v572, %v909
        %v974 = vadd.f32 %v573, %v910
        %v975 = vadd.f32 %v574, %v911
        %v976 = vadd.f32 %v575, %v912
        %v977 = vadd.f32 %v576, %v913
        %v978 = vadd.f32 %v577, %v914
        %v979 = vadd.f32 %v578, %v915
        %v980 = vadd.f32 %v579, %v916
        %981 = vset.pattern.permute.xlu0 2
        %982 = vperm.xlu0 %981, %v420
        %v983 = vpop.permute.xlu0 %982
        %985 = vset.pattern.permute.xlu0 2
        %986 = vperm.xlu0 %985, %v421
        %v987 = vpop.permute.xlu0 %986
        %989 = vset.pattern.permute.xlu0 2
        %990 = vperm.xlu0 %989, %v422
        %v991 = vpop.permute.xlu0 %990
        %993 = vset.pattern.permute.xlu0 2
        %994 = vperm.xlu0 %993, %v423
        %v995 = vpop.permute.xlu0 %994
        %997 = vset.pattern.permute.xlu0 2
        %998 = vperm.xlu0 %997, %v424
        %v999 = vpop.permute.xlu0 %998
        %1001 = vset.pattern.permute.xlu0 2
        %1002 = vperm.xlu0 %1001, %v425
        %v1003 = vpop.permute.xlu0 %1002
        %1005 = vset.pattern.permute.xlu0 2
        %1006 = vperm.xlu0 %1005, %v426
        %v1007 = vpop.permute.xlu0 %1006
        %1009 = vset.pattern.permute.xlu0 2
        %1010 = vperm.xlu0 %1009, %v427
        %v1011 = vpop.permute.xlu0 %1010
        %1013 = vset.pattern.permute.xlu0 2
        %1014 = vperm.xlu0 %1013, %v428
        %v1015 = vpop.permute.xlu0 %1014
        %1017 = vset.pattern.permute.xlu0 2
        %1018 = vperm.xlu0 %1017, %v429
        %v1019 = vpop.permute.xlu0 %1018
        %1021 = vset.pattern.permute.xlu0 2
        %1022 = vperm.xlu0 %1021, %v430
        %v1023 = vpop.permute.xlu0 %1022
        %1025 = vset.pattern.permute.xlu0 2
        %1026 = vperm.xlu0 %1025, %v431
        %v1027 = vpop.permute.xlu0 %1026
        %1029 = vset.pattern.permute.xlu0 2
        %1030 = vperm.xlu0 %1029, %v432
        %v1031 = vpop.permute.xlu0 %1030
        %1033 = vset.pattern.permute.xlu0 2
        %1034 = vperm.xlu0 %1033, %v433
        %v1035 = vpop.permute.xlu0 %1034
        %1037 = vset.pattern.permute.xlu0 2
        %1038 = vperm.xlu0 %1037, %v434
        %v1039 = vpop.permute.xlu0 %1038
        %1041 = vset.pattern.permute.xlu0 2
        %1042 = vperm.xlu0 %1041, %v435
        %v1043 = vpop.permute.xlu0 %1042
        %v1045 = vmul.f32 %v983, %v580
        %v1046 = vmul.f32 %v983, %v581
        %v1047 = vmul.f32 %v983, %v582
        %v1048 = vmul.f32 %v987, %v583
        %v1049 = vmul.f32 %v987, %v584
        %v1050 = vmul.f32 %v987, %v585
        %v1051 = vmul.f32 %v991, %v586
        %v1052 = vmul.f32 %v991, %v587
        %v1053 = vmul.f32 %v991, %v588
        %v1054 = vmul.f32 %v995, %v589
        %v1055 = vmul.f32 %v995, %v590
        %v1056 = vmul.f32 %v995, %v591
        %v1057 = vmul.f32 %v999, %v592
        %v1058 = vmul.f32 %v999, %v593
        %v1059 = vmul.f32 %v999, %v594
        %v1060 = vmul.f32 %v1003, %v595
        %v1061 = vmul.f32 %v1003, %v596
        %v1062 = vmul.f32 %v1003, %v597
        %v1063 = vmul.f32 %v1007, %v598
        %v1064 = vmul.f32 %v1007, %v599
        %v1065 = vmul.f32 %v1007, %v600
        %v1066 = vmul.f32 %v1011, %v601
        %v1067 = vmul.f32 %v1011, %v602
        %v1068 = vmul.f32 %v1011, %v603
        %v1069 = vmul.f32 %v1015, %v604
        %v1070 = vmul.f32 %v1015, %v605
        %v1071 = vmul.f32 %v1015, %v606
        %v1072 = vmul.f32 %v1019, %v607
        %v1073 = vmul.f32 %v1019, %v608
        %v1074 = vmul.f32 %v1019, %v609
        %v1075 = vmul.f32 %v1023, %v610
        %v1076 = vmul.f32 %v1023, %v611
        %v1077 = vmul.f32 %v1023, %v612
        %v1078 = vmul.f32 %v1027, %v613
        %v1079 = vmul.f32 %v1027, %v614
        %v1080 = vmul.f32 %v1027, %v615
        %v1081 = vmul.f32 %v1031, %v616
        %v1082 = vmul.f32 %v1031, %v617
        %v1083 = vmul.f32 %v1031, %v618
        %v1084 = vmul.f32 %v1035, %v619
        %v1085 = vmul.f32 %v1035, %v620
        %v1086 = vmul.f32 %v1035, %v621
        %v1087 = vmul.f32 %v1039, %v622
        %v1088 = vmul.f32 %v1039, %v623
        %v1089 = vmul.f32 %v1039, %v624
        %v1090 = vmul.f32 %v1043, %v625
        %v1091 = vmul.f32 %v1043, %v626
        %v1092 = vmul.f32 %v1043, %v627
        %1141 = vrot.lane.b32.xlu0 %v1045, 124
        %v1142 = vpop.permute.xlu0 %1141
        %1143 = vrot.lane.b32.xlu0 %v1046, 124
        %v1144 = vpop.permute.xlu0 %1143
        %1145 = vrot.lane.b32.xlu0 %v1047, 124
        %v1146 = vpop.permute.xlu0 %1145
        %1147 = vrot.lane.b32.xlu0 %v1048, 124
        %v1148 = vpop.permute.xlu0 %1147
        %1149 = vrot.lane.b32.xlu0 %v1049, 124
        %v1150 = vpop.permute.xlu0 %1149
        %1151 = vrot.lane.b32.xlu0 %v1050, 124
        %v1152 = vpop.permute.xlu0 %1151
        %1153 = vrot.lane.b32.xlu0 %v1051, 124
        %v1154 = vpop.permute.xlu0 %1153
        %1155 = vrot.lane.b32.xlu0 %v1052, 124
        %v1156 = vpop.permute.xlu0 %1155
        %1157 = vrot.lane.b32.xlu0 %v1053, 124
        %v1158 = vpop.permute.xlu0 %1157
        %1159 = vrot.lane.b32.xlu0 %v1054, 124
        %v1160 = vpop.permute.xlu0 %1159
        %1161 = vrot.lane.b32.xlu0 %v1055, 124
        %v1162 = vpop.permute.xlu0 %1161
        %1163 = vrot.lane.b32.xlu0 %v1056, 124
        %v1164 = vpop.permute.xlu0 %1163
        %1165 = vrot.lane.b32.xlu0 %v1057, 124
        %v1166 = vpop.permute.xlu0 %1165
        %1167 = vrot.lane.b32.xlu0 %v1058, 124
        %v1168 = vpop.permute.xlu0 %1167
        %1169 = vrot.lane.b32.xlu0 %v1059, 124
        %v1170 = vpop.permute.xlu0 %1169
        %1171 = vrot.lane.b32.xlu0 %v1060, 124
        %v1172 = vpop.permute.xlu0 %1171
        %1173 = vrot.lane.b32.xlu0 %v1061, 124
        %v1174 = vpop.permute.xlu0 %1173
        %1175 = vrot.lane.b32.xlu0 %v1062, 124
        %v1176 = vpop.permute.xlu0 %1175
        %1177 = vrot.lane.b32.xlu0 %v1063, 124
        %v1178 = vpop.permute.xlu0 %1177
        %1179 = vrot.lane.b32.xlu0 %v1064, 124
        %v1180 = vpop.permute.xlu0 %1179
        %1181 = vrot.lane.b32.xlu0 %v1065, 124
        %v1182 = vpop.permute.xlu0 %1181
        %1183 = vrot.lane.b32.xlu0 %v1066, 124
        %v1184 = vpop.permute.xlu0 %1183
        %1185 = vrot.lane.b32.xlu0 %v1067, 124
        %v1186 = vpop.permute.xlu0 %1185
        %1187 = vrot.lane.b32.xlu0 %v1068, 124
        %v1188 = vpop.permute.xlu0 %1187
        %1189 = vrot.lane.b32.xlu0 %v1069, 124
        %v1190 = vpop.permute.xlu0 %1189
        %1191 = vrot.lane.b32.xlu0 %v1070, 124
        %v1192 = vpop.permute.xlu0 %1191
        %1193 = vrot.lane.b32.xlu0 %v1071, 124
        %v1194 = vpop.permute.xlu0 %1193
        %1195 = vrot.lane.b32.xlu0 %v1072, 124
        %v1196 = vpop.permute.xlu0 %1195
        %1197 = vrot.lane.b32.xlu0 %v1073, 124
        %v1198 = vpop.permute.xlu0 %1197
        %1199 = vrot.lane.b32.xlu0 %v1074, 124
        %v1200 = vpop.permute.xlu0 %1199
        %1201 = vrot.lane.b32.xlu0 %v1075, 124
        %v1202 = vpop.permute.xlu0 %1201
        %1203 = vrot.lane.b32.xlu0 %v1076, 124
        %v1204 = vpop.permute.xlu0 %1203
        %1205 = vrot.lane.b32.xlu0 %v1077, 124
        %v1206 = vpop.permute.xlu0 %1205
        %1207 = vrot.lane.b32.xlu0 %v1078, 124
        %v1208 = vpop.permute.xlu0 %1207
        %1209 = vrot.lane.b32.xlu0 %v1079, 124
        %v1210 = vpop.permute.xlu0 %1209
        %1211 = vrot.lane.b32.xlu0 %v1080, 124
        %v1212 = vpop.permute.xlu0 %1211
        %1213 = vrot.lane.b32.xlu0 %v1081, 124
        %v1214 = vpop.permute.xlu0 %1213
        %1215 = vrot.lane.b32.xlu0 %v1082, 124
        %v1216 = vpop.permute.xlu0 %1215
        %1217 = vrot.lane.b32.xlu0 %v1083, 124
        %v1218 = vpop.permute.xlu0 %1217
        %1219 = vrot.lane.b32.xlu0 %v1084, 124
        %v1220 = vpop.permute.xlu0 %1219
        %1221 = vrot.lane.b32.xlu0 %v1085, 124
        %v1222 = vpop.permute.xlu0 %1221
        %1223 = vrot.lane.b32.xlu0 %v1086, 124
        %v1224 = vpop.permute.xlu0 %1223
        %1225 = vrot.lane.b32.xlu0 %v1087, 124
        %v1226 = vpop.permute.xlu0 %1225
        %1227 = vrot.lane.b32.xlu0 %v1088, 124
        %v1228 = vpop.permute.xlu0 %1227
        %1229 = vrot.lane.b32.xlu0 %v1089, 124
        %v1230 = vpop.permute.xlu0 %1229
        %1231 = vrot.lane.b32.xlu0 %v1090, 124
        %v1232 = vpop.permute.xlu0 %1231
        %1233 = vrot.lane.b32.xlu0 %v1091, 124
        %v1234 = vpop.permute.xlu0 %1233
        %1235 = vrot.lane.b32.xlu0 %v1092, 124
        %v1236 = vpop.permute.xlu0 %1235
        %vm1237 = vcmask 1014784
        %v1238 = vsel %vm1237, %v1142, %v1144
        %v1239 = vsel %vm1237, %v1144, %v1146
        %v1240 = vsel %vm1237, %v1148, %v1150
        %v1241 = vsel %vm1237, %v1150, %v1152
        %v1242 = vsel %vm1237, %v1154, %v1156
        %v1243 = vsel %vm1237, %v1156, %v1158
        %v1244 = vsel %vm1237, %v1160, %v1162
        %v1245 = vsel %vm1237, %v1162, %v1164
        %v1246 = vsel %vm1237, %v1166, %v1168
        %v1247 = vsel %vm1237, %v1168, %v1170
        %v1248 = vsel %vm1237, %v1172, %v1174
        %v1249 = vsel %vm1237, %v1174, %v1176
        %v1250 = vsel %vm1237, %v1178, %v1180
        %v1251 = vsel %vm1237, %v1180, %v1182
        %v1252 = vsel %vm1237, %v1184, %v1186
        %v1253 = vsel %vm1237, %v1186, %v1188
        %v1254 = vsel %vm1237, %v1190, %v1192
        %v1255 = vsel %vm1237, %v1192, %v1194
        %v1256 = vsel %vm1237, %v1196, %v1198
        %v1257 = vsel %vm1237, %v1198, %v1200
        %v1258 = vsel %vm1237, %v1202, %v1204
        %v1259 = vsel %vm1237, %v1204, %v1206
        %v1260 = vsel %vm1237, %v1208, %v1210
        %v1261 = vsel %vm1237, %v1210, %v1212
        %v1262 = vsel %vm1237, %v1214, %v1216
        %v1263 = vsel %vm1237, %v1216, %v1218
        %v1264 = vsel %vm1237, %v1220, %v1222
        %v1265 = vsel %vm1237, %v1222, %v1224
        %v1266 = vsel %vm1237, %v1226, %v1228
        %v1267 = vsel %vm1237, %v1228, %v1230
        %v1268 = vsel %vm1237, %v1232, %v1234
        %v1269 = vsel %vm1237, %v1234, %v1236
        %v1302 = vadd.f32 %v949, %v1238
        %v1303 = vadd.f32 %v950, %v1239
        %v1304 = vadd.f32 %v951, %v1240
        %v1305 = vadd.f32 %v952, %v1241
        %v1306 = vadd.f32 %v953, %v1242
        %v1307 = vadd.f32 %v954, %v1243
        %v1308 = vadd.f32 %v955, %v1244
        %v1309 = vadd.f32 %v956, %v1245
        %v1310 = vadd.f32 %v957, %v1246
        %v1311 = vadd.f32 %v958, %v1247
        %v1312 = vadd.f32 %v959, %v1248
        %v1313 = vadd.f32 %v960, %v1249
        %v1314 = vadd.f32 %v961, %v1250
        %v1315 = vadd.f32 %v962, %v1251
        %v1316 = vadd.f32 %v963, %v1252
        %v1317 = vadd.f32 %v964, %v1253
        %v1318 = vadd.f32 %v965, %v1254
        %v1319 = vadd.f32 %v966, %v1255
        %v1320 = vadd.f32 %v967, %v1256
        %v1321 = vadd.f32 %v968, %v1257
        %v1322 = vadd.f32 %v969, %v1258
        %v1323 = vadd.f32 %v970, %v1259
        %v1324 = vadd.f32 %v971, %v1260
        %v1325 = vadd.f32 %v972, %v1261
        %v1326 = vadd.f32 %v973, %v1262
        %v1327 = vadd.f32 %v974, %v1263
        %v1328 = vadd.f32 %v975, %v1264
        %v1329 = vadd.f32 %v976, %v1265
        %v1330 = vadd.f32 %v977, %v1266
        %v1331 = vadd.f32 %v978, %v1267
        %v1332 = vadd.f32 %v979, %v1268
        %v1333 = vadd.f32 %v980, %v1269
        %v1334 = vld [vmem:[#allocation5] sm:$0x1]
        %vm1335 = vcmp.ge.f32.partialorder %v1302, 0.0
        %vm1336 = vcmp.ge.f32.partialorder %v1303, 0.0
        %vm1337 = vcmp.ge.f32.partialorder %v1304, 0.0
        %vm1338 = vcmp.ge.f32.partialorder %v1305, 0.0
        %vm1339 = vcmp.ge.f32.partialorder %v1306, 0.0
        %vm1340 = vcmp.ge.f32.partialorder %v1307, 0.0
        %vm1341 = vcmp.ge.f32.partialorder %v1308, 0.0
        %vm1342 = vcmp.ge.f32.partialorder %v1309, 0.0
        %vm1343 = vcmp.ge.f32.partialorder %v1310, 0.0
        %vm1344 = vcmp.ge.f32.partialorder %v1311, 0.0
        %vm1345 = vcmp.ge.f32.partialorder %v1312, 0.0
        %vm1346 = vcmp.ge.f32.partialorder %v1313, 0.0
        %vm1347 = vcmp.ge.f32.partialorder %v1314, 0.0
        %vm1348 = vcmp.ge.f32.partialorder %v1315, 0.0
        %vm1349 = vcmp.ge.f32.partialorder %v1316, 0.0
        %vm1350 = vcmp.ge.f32.partialorder %v1317, 0.0
        %vm1351 = vcmp.ge.f32.partialorder %v1318, 0.0
        %vm1352 = vcmp.ge.f32.partialorder %v1319, 0.0
        %vm1353 = vcmp.ge.f32.partialorder %v1320, 0.0
        %vm1354 = vcmp.ge.f32.partialorder %v1321, 0.0
        %vm1355 = vcmp.ge.f32.partialorder %v1322, 0.0
        %vm1356 = vcmp.ge.f32.partialorder %v1323, 0.0
        %vm1357 = vcmp.ge.f32.partialorder %v1324, 0.0
        %vm1358 = vcmp.ge.f32.partialorder %v1325, 0.0
        %vm1359 = vcmp.ge.f32.partialorder %v1326, 0.0
        %vm1360 = vcmp.ge.f32.partialorder %v1327, 0.0
        %vm1361 = vcmp.ge.f32.partialorder %v1328, 0.0
        %vm1362 = vcmp.ge.f32.partialorder %v1329, 0.0
        %vm1363 = vcmp.ge.f32.partialorder %v1330, 0.0
        %vm1364 = vcmp.ge.f32.partialorder %v1331, 0.0
        %vm1365 = vcmp.ge.f32.partialorder %v1332, 0.0
        %vm1366 = vcmp.ge.f32.partialorder %v1333, 0.0
        %v1368 = vperm.slane %v1334, 0
        %1369 = vset.pattern.permute.xlu0 0
        %1370 = vperm.xlu0 %1369, %v1368
        %v1371 = vpop.permute.xlu0 %1370
        %v1373 = vmul.f32 %v1371, %v1302
        %v1374 = vmul.f32 %v1371, %v1303
        %v1375 = vmul.f32 %v1371, %v1304
        %v1376 = vmul.f32 %v1371, %v1305
        %v1377 = vmul.f32 %v1371, %v1306
        %v1378 = vmul.f32 %v1371, %v1307
        %v1379 = vmul.f32 %v1371, %v1308
        %v1380 = vmul.f32 %v1371, %v1309
        %v1381 = vmul.f32 %v1371, %v1310
        %v1382 = vmul.f32 %v1371, %v1311
        %v1383 = vmul.f32 %v1371, %v1312
        %v1384 = vmul.f32 %v1371, %v1313
        %v1385 = vmul.f32 %v1371, %v1314
        %v1386 = vmul.f32 %v1371, %v1315
        %v1387 = vmul.f32 %v1371, %v1316
        %v1388 = vmul.f32 %v1371, %v1317
        %v1389 = vmul.f32 %v1371, %v1318
        %v1390 = vmul.f32 %v1371, %v1319
        %v1391 = vmul.f32 %v1371, %v1320
        %v1392 = vmul.f32 %v1371, %v1321
        %v1393 = vmul.f32 %v1371, %v1322
        %v1394 = vmul.f32 %v1371, %v1323
        %v1395 = vmul.f32 %v1371, %v1324
        %v1396 = vmul.f32 %v1371, %v1325
        %v1397 = vmul.f32 %v1371, %v1326
        %v1398 = vmul.f32 %v1371, %v1327
        %v1399 = vmul.f32 %v1371, %v1328
        %v1400 = vmul.f32 %v1371, %v1329
        %v1401 = vmul.f32 %v1371, %v1330
        %v1402 = vmul.f32 %v1371, %v1331
        %v1403 = vmul.f32 %v1371, %v1332
        %v1404 = vmul.f32 %v1371, %v1333
        %v1405 = vsel %vm1335, %v1302, %v1373
        %v1406 = vsel %vm1336, %v1303, %v1374
        %v1407 = vsel %vm1337, %v1304, %v1375
        %v1408 = vsel %vm1338, %v1305, %v1376
        %v1409 = vsel %vm1339, %v1306, %v1377
        %v1410 = vsel %vm1340, %v1307, %v1378
        %v1411 = vsel %vm1341, %v1308, %v1379
        %v1412 = vsel %vm1342, %v1309, %v1380
        %v1413 = vsel %vm1343, %v1310, %v1381
        %v1414 = vsel %vm1344, %v1311, %v1382
        %v1415 = vsel %vm1345, %v1312, %v1383
        %v1416 = vsel %vm1346, %v1313, %v1384
        %v1417 = vsel %vm1347, %v1314, %v1385
        %v1418 = vsel %vm1348, %v1315, %v1386
        %v1419 = vsel %vm1349, %v1316, %v1387
        %v1420 = vsel %vm1350, %v1317, %v1388
        %v1421 = vsel %vm1351, %v1318, %v1389
        %v1422 = vsel %vm1352, %v1319, %v1390
        %v1423 = vsel %vm1353, %v1320, %v1391
        %v1424 = vsel %vm1354, %v1321, %v1392
        %v1425 = vsel %vm1355, %v1322, %v1393
        %v1426 = vsel %vm1356, %v1323, %v1394
        %v1427 = vsel %vm1357, %v1324, %v1395
        %v1428 = vsel %vm1358, %v1325, %v1396
        %v1429 = vsel %vm1359, %v1326, %v1397
        %v1430 = vsel %vm1360, %v1327, %v1398
        %v1431 = vsel %vm1361, %v1328, %v1399
        %v1432 = vsel %vm1362, %v1329, %v1400
        %v1433 = vsel %vm1363, %v1330, %v1401
        %v1434 = vsel %vm1364, %v1331, %v1402
        %v1435 = vsel %vm1365, %v1332, %v1403
        %v1436 = vsel %vm1366, %v1333, %v1404
        %v1437 = vadd.f32 %v1405, %v1406
        %v1438 = vadd.f32 %v1437, %v1407
        %v1439 = vadd.f32 %v1438, %v1408
        %v1440 = vadd.f32 %v1439, %v1409
        %v1441 = vadd.f32 %v1440, %v1410
        %v1442 = vadd.f32 %v1441, %v1411
        %v1443 = vadd.f32 %v1442, %v1412
        %v1444 = vadd.f32 %v1443, %v1413
        %v1445 = vadd.f32 %v1444, %v1414
        %v1446 = vadd.f32 %v1445, %v1415
        %v1447 = vadd.f32 %v1446, %v1416
        %v1448 = vadd.f32 %v1447, %v1417
        %v1449 = vadd.f32 %v1448, %v1418
        %v1450 = vadd.f32 %v1449, %v1419
        %v1451 = vadd.f32 %v1450, %v1420
        %v1452 = vadd.f32 %v1451, %v1421
        %v1453 = vadd.f32 %v1452, %v1422
        %v1454 = vadd.f32 %v1453, %v1423
        %v1455 = vadd.f32 %v1454, %v1424
        %v1456 = vadd.f32 %v1455, %v1425
        %v1457 = vadd.f32 %v1456, %v1426
        %v1458 = vadd.f32 %v1457, %v1427
        %v1459 = vadd.f32 %v1458, %v1428
        %v1460 = vadd.f32 %v1459, %v1429
        %v1461 = vadd.f32 %v1460, %v1430
        %v1462 = vadd.f32 %v1461, %v1431
        %v1463 = vadd.f32 %v1462, %v1432
        %v1464 = vadd.f32 %v1463, %v1433
        %v1465 = vadd.f32 %v1464, %v1434
        %v1466 = vadd.f32 %v1465, %v1435
        %v1467 = vadd.f32 %v1466, %v1436
        %1468 = vadd.xlane.f32.xlu0 %v1467
        %v1469 = vpop.xlane.xlu0 %1468
        %v1470 = vrot.slane %v1469, 4
        %v1471 = vadd.f32 %v1469, %v1470
        %v1472 = vrot.slane %v1471, 2
        %v1473 = vadd.f32 %v1471, %v1472
        %v1474 = vrot.slane %v1473, 1
        %v1475 = vadd.f32 %v1473, %v1474
        %s1476 = vtos %v1475
        %v1477 = vstv %s1476
        %v1478 = vmul.f32 %v1405, %v1405
        %v1479 = vmul.f32 %v1406, %v1406
        %v1480 = vmul.f32 %v1407, %v1407
        %v1481 = vmul.f32 %v1408, %v1408
        %v1482 = vmul.f32 %v1409, %v1409
        %v1483 = vmul.f32 %v1410, %v1410
        %v1484 = vmul.f32 %v1411, %v1411
        %v1485 = vmul.f32 %v1412, %v1412
        %v1486 = vmul.f32 %v1413, %v1413
        %v1487 = vmul.f32 %v1414, %v1414
        %v1488 = vmul.f32 %v1415, %v1415
        %v1489 = vmul.f32 %v1416, %v1416
        %v1490 = vmul.f32 %v1417, %v1417
        %v1491 = vmul.f32 %v1418, %v1418
        %v1492 = vmul.f32 %v1419, %v1419
        %v1493 = vmul.f32 %v1420, %v1420
        %v1494 = vmul.f32 %v1421, %v1421
        %v1495 = vmul.f32 %v1422, %v1422
        %v1496 = vmul.f32 %v1423, %v1423
        %v1497 = vmul.f32 %v1424, %v1424
        %v1498 = vmul.f32 %v1425, %v1425
        %v1499 = vmul.f32 %v1426, %v1426
        %v1500 = vmul.f32 %v1427, %v1427
        %v1501 = vmul.f32 %v1428, %v1428
        %v1502 = vmul.f32 %v1429, %v1429
        %v1503 = vmul.f32 %v1430, %v1430
        %v1504 = vmul.f32 %v1431, %v1431
        %v1505 = vmul.f32 %v1432, %v1432
        %v1506 = vmul.f32 %v1433, %v1433
        %v1507 = vmul.f32 %v1434, %v1434
        %v1508 = vmul.f32 %v1435, %v1435
        %v1509 = vmul.f32 %v1436, %v1436
        %v1510 = vadd.f32 %v1478, %v1479
        %v1511 = vadd.f32 %v1510, %v1480
        %v1512 = vadd.f32 %v1511, %v1481
        %v1513 = vadd.f32 %v1512, %v1482
        %v1514 = vadd.f32 %v1513, %v1483
        %v1515 = vadd.f32 %v1514, %v1484
        %v1516 = vadd.f32 %v1515, %v1485
        %v1517 = vadd.f32 %v1516, %v1486
        %v1518 = vadd.f32 %v1517, %v1487
        %v1519 = vadd.f32 %v1518, %v1488
        %v1520 = vadd.f32 %v1519, %v1489
        %v1521 = vadd.f32 %v1520, %v1490
        %v1522 = vadd.f32 %v1521, %v1491
        %v1523 = vadd.f32 %v1522, %v1492
        %v1524 = vadd.f32 %v1523, %v1493
        %v1525 = vadd.f32 %v1524, %v1494
        %v1526 = vadd.f32 %v1525, %v1495
        %v1527 = vadd.f32 %v1526, %v1496
        %v1528 = vadd.f32 %v1527, %v1497
        %v1529 = vadd.f32 %v1528, %v1498
        %v1530 = vadd.f32 %v1529, %v1499
        %v1531 = vadd.f32 %v1530, %v1500
        %v1532 = vadd.f32 %v1531, %v1501
        %v1533 = vadd.f32 %v1532, %v1502
        %v1534 = vadd.f32 %v1533, %v1503
        %v1535 = vadd.f32 %v1534, %v1504
        %v1536 = vadd.f32 %v1535, %v1505
        %v1537 = vadd.f32 %v1536, %v1506
        %v1538 = vadd.f32 %v1537, %v1507
        %v1539 = vadd.f32 %v1538, %v1508
        %v1540 = vadd.f32 %v1539, %v1509
        %1541 = vadd.xlane.f32.xlu0 %v1540
        %v1542 = vpop.xlane.xlu0 %1541
        %v1543 = vrot.slane %v1542, 4
        %v1544 = vadd.f32 %v1542, %v1543
        %v1545 = vrot.slane %v1544, 2
        %v1546 = vadd.f32 %v1544, %v1545
        %v1547 = vrot.slane %v1546, 1
        %v1548 = vadd.f32 %v1546, %v1547
        %s1549 = vtos %v1548
        %v1550 = vstv %s1549
        %v1551 = vld [vmem:[%s361] sm:$0xff]
        %v1552 = vld [vmem:[%s361 + $0x8] sm:$0xff]
        %v1553 = vld [vmem:[%s361 + $0x10] sm:$0xff]
        %v1554 = vld [vmem:[%s361 + $0x18] sm:$0xff]
        %v1555 = vld [vmem:[%s361 + $0x20] sm:$0xff]
        %v1556 = vld [vmem:[%s361 + $0x28] sm:$0xff]
        %v1557 = vld [vmem:[%s361 + $0x30] sm:$0xff]
        %v1558 = vld [vmem:[%s361 + $0x38] sm:$0xff]
        %v1559 = vld [vmem:[%s361 + $0x40] sm:$0xff]
        %v1560 = vld [vmem:[%s361 + $0x48] sm:$0xff]
        %v1561 = vld [vmem:[%s361 + $0x50] sm:$0xff]
        %v1562 = vld [vmem:[%s361 + $0x58] sm:$0xff]
        %v1563 = vld [vmem:[%s361 + $0x60] sm:$0xff]
        %v1564 = vld [vmem:[%s361 + $0x68] sm:$0xff]
        %v1565 = vld [vmem:[%s361 + $0x70] sm:$0xff]
        %v1566 = vld [vmem:[%s361 + $0x78] sm:$0xff]
        %1567 = vmatpush.msra.mxu0 %v1435
        %1568 = vmatpush.msra.mxu0 %v1433
        %1569 = vmatpush.msra.mxu0 %v1431
        %1570 = vmatpush.msra.mxu0 %v1429
        %1571 = vmatpush.msra.mxu0 %v1427
        %1572 = vmatpush.msra.mxu0 %v1425
        %1573 = vmatpush.msra.mxu0 %v1423
        %1574 = vmatpush.msra.mxu0 %v1421
        %1575 = vmatpush.msra.mxu0 %v1419
        %1576 = vmatpush.msra.mxu0 %v1417
        %1577 = vmatpush.msra.mxu0 %v1415
        %1578 = vmatpush.msra.mxu0 %v1413
        %1579 = vmatpush.msra.mxu0 %v1411
        %1580 = vmatpush.msra.mxu0 %v1409
        %1581 = vmatpush.msra.mxu0 %v1407
        %1582 = vmatpush.msra.mxu0 %v1405
        %1583 = vmatmul.f32.gmra.mxu0 %v1551
        %v1584 = vpop.f32.mrf.mxu0
        %v1585 = vadd.f32 0.0, %v1584
        %1586 = vmatmul.f32.gmra.mxu0 %v1552
        %v1587 = vpop.f32.mrf.mxu0
        %v1588 = vadd.f32 0.0, %v1587
        %1589 = vmatmul.f32.gmra.mxu0 %v1553
        %v1590 = vpop.f32.mrf.mxu0
        %v1591 = vadd.f32 0.0, %v1590
        %1592 = vmatmul.f32.gmra.mxu0 %v1554
        %v1593 = vpop.f32.mrf.mxu0
        %v1594 = vadd.f32 0.0, %v1593
        %1595 = vmatmul.f32.gmra.mxu0 %v1555
        %v1596 = vpop.f32.mrf.mxu0
        %v1597 = vadd.f32 0.0, %v1596
        %1598 = vmatmul.f32.gmra.mxu0 %v1556
        %v1599 = vpop.f32.mrf.mxu0
        %v1600 = vadd.f32 0.0, %v1599
        %1601 = vmatmul.f32.gmra.mxu0 %v1557
        %v1602 = vpop.f32.mrf.mxu0
        %v1603 = vadd.f32 0.0, %v1602
        %1604 = vmatmul.f32.gmra.mxu0 %v1558
        %v1605 = vpop.f32.mrf.mxu0
        %v1606 = vadd.f32 0.0, %v1605
        %1607 = vmatmul.f32.gmra.mxu0 %v1559
        %v1608 = vpop.f32.mrf.mxu0
        %v1609 = vadd.f32 0.0, %v1608
        %1610 = vmatmul.f32.gmra.mxu0 %v1560
        %v1611 = vpop.f32.mrf.mxu0
        %v1612 = vadd.f32 0.0, %v1611
        %1613 = vmatmul.f32.gmra.mxu0 %v1561
        %v1614 = vpop.f32.mrf.mxu0
        %v1615 = vadd.f32 0.0, %v1614
        %1616 = vmatmul.f32.gmra.mxu0 %v1562
        %v1617 = vpop.f32.mrf.mxu0
        %v1618 = vadd.f32 0.0, %v1617
        %1619 = vmatmul.f32.gmra.mxu0 %v1563
        %v1620 = vpop.f32.mrf.mxu0
        %v1621 = vadd.f32 0.0, %v1620
        %1622 = vmatmul.f32.gmra.mxu0 %v1564
        %v1623 = vpop.f32.mrf.mxu0
        %v1624 = vadd.f32 0.0, %v1623
        %1625 = vmatmul.f32.gmra.mxu0 %v1565
        %v1626 = vpop.f32.mrf.mxu0
        %v1627 = vadd.f32 0.0, %v1626
        %1628 = vmatmul.f32.gmra.mxu0 %v1566
        %v1629 = vpop.f32.mrf.mxu0
        %v1630 = vadd.f32 0.0, %v1629
        %1631 = vdwg.mxu0
        %1632 = vmatpush.msra.mxu0 %v1436
        %1633 = vmatpush.msra.mxu0 %v1434
        %1634 = vmatpush.msra.mxu0 %v1432
        %1635 = vmatpush.msra.mxu0 %v1430
        %1636 = vmatpush.msra.mxu0 %v1428
        %1637 = vmatpush.msra.mxu0 %v1426
        %1638 = vmatpush.msra.mxu0 %v1424
        %1639 = vmatpush.msra.mxu0 %v1422
        %1640 = vmatpush.msra.mxu0 %v1420
        %1641 = vmatpush.msra.mxu0 %v1418
        %1642 = vmatpush.msra.mxu0 %v1416
        %1643 = vmatpush.msra.mxu0 %v1414
        %1644 = vmatpush.msra.mxu0 %v1412
        %1645 = vmatpush.msra.mxu0 %v1410
        %1646 = vmatpush.msra.mxu0 %v1408
        %1647 = vmatpush.msra.mxu0 %v1406
        %1648 = vmatmul.f32.gmra.mxu0 %v1551
        %v1649 = vpop.f32.mrf.mxu0
        %v1650 = vadd.f32 0.0, %v1649
        %1651 = vmatmul.f32.gmra.mxu0 %v1552
        %v1652 = vpop.f32.mrf.mxu0
        %v1653 = vadd.f32 0.0, %v1652
        %1654 = vmatmul.f32.gmra.mxu0 %v1553
        %v1655 = vpop.f32.mrf.mxu0
        %v1656 = vadd.f32 0.0, %v1655
        %1657 = vmatmul.f32.gmra.mxu0 %v1554
        %v1658 = vpop.f32.mrf.mxu0
        %v1659 = vadd.f32 0.0, %v1658
        %1660 = vmatmul.f32.gmra.mxu0 %v1555
        %v1661 = vpop.f32.mrf.mxu0
        %v1662 = vadd.f32 0.0, %v1661
        %1663 = vmatmul.f32.gmra.mxu0 %v1556
        %v1664 = vpop.f32.mrf.mxu0
        %v1665 = vadd.f32 0.0, %v1664
        %1666 = vmatmul.f32.gmra.mxu0 %v1557
        %v1667 = vpop.f32.mrf.mxu0
        %v1668 = vadd.f32 0.0, %v1667
        %1669 = vmatmul.f32.gmra.mxu0 %v1558
        %v1670 = vpop.f32.mrf.mxu0
        %v1671 = vadd.f32 0.0, %v1670
        %1672 = vmatmul.f32.gmra.mxu0 %v1559
        %v1673 = vpop.f32.mrf.mxu0
        %v1674 = vadd.f32 0.0, %v1673
        %1675 = vmatmul.f32.gmra.mxu0 %v1560
        %v1676 = vpop.f32.mrf.mxu0
        %v1677 = vadd.f32 0.0, %v1676
        %1678 = vmatmul.f32.gmra.mxu0 %v1561
        %v1679 = vpop.f32.mrf.mxu0
        %v1680 = vadd.f32 0.0, %v1679
        %1681 = vmatmul.f32.gmra.mxu0 %v1562
        %v1682 = vpop.f32.mrf.mxu0
        %v1683 = vadd.f32 0.0, %v1682
        %1684 = vmatmul.f32.gmra.mxu0 %v1563
        %v1685 = vpop.f32.mrf.mxu0
        %v1686 = vadd.f32 0.0, %v1685
        %1687 = vmatmul.f32.gmra.mxu0 %v1564
        %v1688 = vpop.f32.mrf.mxu0
        %v1689 = vadd.f32 0.0, %v1688
        %1690 = vmatmul.f32.gmra.mxu0 %v1565
        %v1691 = vpop.f32.mrf.mxu0
        %v1692 = vadd.f32 0.0, %v1691
        %1693 = vmatmul.f32.gmra.mxu0 %v1566
        %v1694 = vpop.f32.mrf.mxu0
        %v1695 = vadd.f32 0.0, %v1694
        %1696 = vdwg.mxu0
        %p1697 = scmp.eq.s32.totalorder %s27, 0
        // Predicated region
        $region83: #{depthwise_separable_conv.1} parent=77 // pred_check
          %p1698 = pneg %p1697
        $region84: #{depthwise_separable_conv.1} parent=77 // pred_check_branch
          %1700 = sbr.rel (%p1698) target = $region86
        $region85: #{depthwise_separable_conv.1} parent=77 // pred_region
          %1701 = vst [vmem:[#allocation2] sm:$0xff] %v1585
          %1702 = vst [vmem:[#allocation2 + $0x8] sm:$0xff] %v1650
          %1703 = vst [vmem:[#allocation2 + $0x10] sm:$0xff] %v1588
          %1704 = vst [vmem:[#allocation2 + $0x18] sm:$0xff] %v1653
          %1705 = vst [vmem:[#allocation2 + $0x20] sm:$0xff] %v1591
          %1706 = vst [vmem:[#allocation2 + $0x28] sm:$0xff] %v1656
          %1707 = vst [vmem:[#allocation2 + $0x30] sm:$0xff] %v1594
          %1708 = vst [vmem:[#allocation2 + $0x38] sm:$0xff] %v1659
          %1709 = vst [vmem:[#allocation2 + $0x40] sm:$0xff] %v1597
          %1710 = vst [vmem:[#allocation2 + $0x48] sm:$0xff] %v1662
          %1711 = vst [vmem:[#allocation2 + $0x50] sm:$0xff] %v1600
          %1712 = vst [vmem:[#allocation2 + $0x58] sm:$0xff] %v1665
          %1713 = vst [vmem:[#allocation2 + $0x60] sm:$0xff] %v1603
          %1714 = vst [vmem:[#allocation2 + $0x68] sm:$0xff] %v1668
          %1715 = vst [vmem:[#allocation2 + $0x70] sm:$0xff] %v1606
          %1716 = vst [vmem:[#allocation2 + $0x78] sm:$0xff] %v1671
          %1717 = vst [vmem:[#allocation2 + $0x80] sm:$0xff] %v1609
          %1718 = vst [vmem:[#allocation2 + $0x88] sm:$0xff] %v1674
          %1719 = vst [vmem:[#allocation2 + $0x90] sm:$0xff] %v1612
          %1720 = vst [vmem:[#allocation2 + $0x98] sm:$0xff] %v1677
          %1721 = vst [vmem:[#allocation2 + $0xa0] sm:$0xff] %v1615
          %1722 = vst [vmem:[#allocation2 + $0xa8] sm:$0xff] %v1680
          %1723 = vst [vmem:[#allocation2 + $0xb0] sm:$0xff] %v1618
          %1724 = vst [vmem:[#allocation2 + $0xb8] sm:$0xff] %v1683
          %1725 = vst [vmem:[#allocation2 + $0xc0] sm:$0xff] %v1621
          %1726 = vst [vmem:[#allocation2 + $0xc8] sm:$0xff] %v1686
          %1727 = vst [vmem:[#allocation2 + $0xd0] sm:$0xff] %v1624
          %1728 = vst [vmem:[#allocation2 + $0xd8] sm:$0xff] %v1689
          %1729 = vst [vmem:[#allocation2 + $0xe0] sm:$0xff] %v1627
          %1730 = vst [vmem:[#allocation2 + $0xe8] sm:$0xff] %v1692
          %1731 = vst [vmem:[#allocation2 + $0xf0] sm:$0xff] %v1630
          %1732 = vst [vmem:[#allocation2 + $0xf8] sm:$0xff] %v1695
          %vm1733 = vcmask 0
          %1734 = vst.msk [vmem:[#allocation3] sm:$0x1] %vm1733, %v1477
          %1735 = vst.msk [vmem:[#allocation4] sm:$0x1] %vm1733, %v1550
        $region86: #{depthwise_separable_conv.1} parent=77 // pred_fallthru
          _
        %p1736 = scmp.ne.s32.totalorder %s27, 0
        // Predicated region
        $region87: #{depthwise_separable_conv.1} parent=77 // pred_check
          %p1737 = pneg %p1736
        $region88: #{depthwise_separable_conv.1} parent=77 // pred_check_branch
          %1739 = sbr.rel (%p1737) target = $region90
        $region89: #{depthwise_separable_conv.1} parent=77 // pred_region
          %v1740 = vld [vmem:[#allocation2] sm:$0xff]
          %v1741 = vld [vmem:[#allocation2 + $0x8] sm:$0xff]
          %v1742 = vld [vmem:[#allocation2 + $0x10] sm:$0xff]
          %v1743 = vld [vmem:[#allocation2 + $0x18] sm:$0xff]
          %v1744 = vld [vmem:[#allocation2 + $0x20] sm:$0xff]
          %v1745 = vld [vmem:[#allocation2 + $0x28] sm:$0xff]
          %v1746 = vld [vmem:[#allocation2 + $0x30] sm:$0xff]
          %v1747 = vld [vmem:[#allocation2 + $0x38] sm:$0xff]
          %v1748 = vld [vmem:[#allocation2 + $0x40] sm:$0xff]
          %v1749 = vld [vmem:[#allocation2 + $0x48] sm:$0xff]
          %v1750 = vld [vmem:[#allocation2 + $0x50] sm:$0xff]
          %v1751 = vld [vmem:[#allocation2 + $0x58] sm:$0xff]
          %v1752 = vld [vmem:[#allocation2 + $0x60] sm:$0xff]
          %v1753 = vld [vmem:[#allocation2 + $0x68] sm:$0xff]
          %v1754 = vld [vmem:[#allocation2 + $0x70] sm:$0xff]
          %v1755 = vld [vmem:[#allocation2 + $0x78] sm:$0xff]
          %v1756 = vld [vmem:[#allocation2 + $0x80] sm:$0xff]
          %v1757 = vld [vmem:[#allocation2 + $0x88] sm:$0xff]
          %v1758 = vld [vmem:[#allocation2 + $0x90] sm:$0xff]
          %v1759 = vld [vmem:[#allocation2 + $0x98] sm:$0xff]
          %v1760 = vld [vmem:[#allocation2 + $0xa0] sm:$0xff]
          %v1761 = vld [vmem:[#allocation2 + $0xa8] sm:$0xff]
          %v1762 = vld [vmem:[#allocation2 + $0xb0] sm:$0xff]
          %v1763 = vld [vmem:[#allocation2 + $0xb8] sm:$0xff]
          %v1764 = vld [vmem:[#allocation2 + $0xc0] sm:$0xff]
          %v1765 = vld [vmem:[#allocation2 + $0xc8] sm:$0xff]
          %v1766 = vld [vmem:[#allocation2 + $0xd0] sm:$0xff]
          %v1767 = vld [vmem:[#allocation2 + $0xd8] sm:$0xff]
          %v1768 = vld [vmem:[#allocation2 + $0xe0] sm:$0xff]
          %v1769 = vld [vmem:[#allocation2 + $0xe8] sm:$0xff]
          %v1770 = vld [vmem:[#allocation2 + $0xf0] sm:$0xff]
          %v1771 = vld [vmem:[#allocation2 + $0xf8] sm:$0xff]
          %v1772 = vadd.f32 %v1740, %v1585
          %v1773 = vadd.f32 %v1741, %v1650
          %v1774 = vadd.f32 %v1742, %v1588
          %v1775 = vadd.f32 %v1743, %v1653
          %v1776 = vadd.f32 %v1744, %v1591
          %v1777 = vadd.f32 %v1745, %v1656
          %v1778 = vadd.f32 %v1746, %v1594
          %v1779 = vadd.f32 %v1747, %v1659
          %v1780 = vadd.f32 %v1748, %v1597
          %v1781 = vadd.f32 %v1749, %v1662
          %v1782 = vadd.f32 %v1750, %v1600
          %v1783 = vadd.f32 %v1751, %v1665
          %v1784 = vadd.f32 %v1752, %v1603
          %v1785 = vadd.f32 %v1753, %v1668
          %v1786 = vadd.f32 %v1754, %v1606
          %v1787 = vadd.f32 %v1755, %v1671
          %v1788 = vadd.f32 %v1756, %v1609
          %v1789 = vadd.f32 %v1757, %v1674
          %v1790 = vadd.f32 %v1758, %v1612
          %v1791 = vadd.f32 %v1759, %v1677
          %v1792 = vadd.f32 %v1760, %v1615
          %v1793 = vadd.f32 %v1761, %v1680
          %v1794 = vadd.f32 %v1762, %v1618
          %v1795 = vadd.f32 %v1763, %v1683
          %v1796 = vadd.f32 %v1764, %v1621
          %v1797 = vadd.f32 %v1765, %v1686
          %v1798 = vadd.f32 %v1766, %v1624
          %v1799 = vadd.f32 %v1767, %v1689
          %v1800 = vadd.f32 %v1768, %v1627
          %v1801 = vadd.f32 %v1769, %v1692
          %v1802 = vadd.f32 %v1770, %v1630
          %v1803 = vadd.f32 %v1771, %v1695
          %1804 = vst [vmem:[#allocation2] sm:$0xff] %v1772
          %1805 = vst [vmem:[#allocation2 + $0x8] sm:$0xff] %v1773
          %1806 = vst [vmem:[#allocation2 + $0x10] sm:$0xff] %v1774
          %1807 = vst [vmem:[#allocation2 + $0x18] sm:$0xff] %v1775
          %1808 = vst [vmem:[#allocation2 + $0x20] sm:$0xff] %v1776
          %1809 = vst [vmem:[#allocation2 + $0x28] sm:$0xff] %v1777
          %1810 = vst [vmem:[#allocation2 + $0x30] sm:$0xff] %v1778
          %1811 = vst [vmem:[#allocation2 + $0x38] sm:$0xff] %v1779
          %1812 = vst [vmem:[#allocation2 + $0x40] sm:$0xff] %v1780
          %1813 = vst [vmem:[#allocation2 + $0x48] sm:$0xff] %v1781
          %1814 = vst [vmem:[#allocation2 + $0x50] sm:$0xff] %v1782
          %1815 = vst [vmem:[#allocation2 + $0x58] sm:$0xff] %v1783
          %1816 = vst [vmem:[#allocation2 + $0x60] sm:$0xff] %v1784
          %1817 = vst [vmem:[#allocation2 + $0x68] sm:$0xff] %v1785
          %1818 = vst [vmem:[#allocation2 + $0x70] sm:$0xff] %v1786
          %1819 = vst [vmem:[#allocation2 + $0x78] sm:$0xff] %v1787
          %1820 = vst [vmem:[#allocation2 + $0x80] sm:$0xff] %v1788
          %1821 = vst [vmem:[#allocation2 + $0x88] sm:$0xff] %v1789
          %1822 = vst [vmem:[#allocation2 + $0x90] sm:$0xff] %v1790
          %1823 = vst [vmem:[#allocation2 + $0x98] sm:$0xff] %v1791
          %1824 = vst [vmem:[#allocation2 + $0xa0] sm:$0xff] %v1792
          %1825 = vst [vmem:[#allocation2 + $0xa8] sm:$0xff] %v1793
          %1826 = vst [vmem:[#allocation2 + $0xb0] sm:$0xff] %v1794
          %1827 = vst [vmem:[#allocation2 + $0xb8] sm:$0xff] %v1795
          %1828 = vst [vmem:[#allocation2 + $0xc0] sm:$0xff] %v1796
          %1829 = vst [vmem:[#allocation2 + $0xc8] sm:$0xff] %v1797
          %1830 = vst [vmem:[#allocation2 + $0xd0] sm:$0xff] %v1798
          %1831 = vst [vmem:[#allocation2 + $0xd8] sm:$0xff] %v1799
          %1832 = vst [vmem:[#allocation2 + $0xe0] sm:$0xff] %v1800
          %1833 = vst [vmem:[#allocation2 + $0xe8] sm:$0xff] %v1801
          %1834 = vst [vmem:[#allocation2 + $0xf0] sm:$0xff] %v1802
          %1835 = vst [vmem:[#allocation2 + $0xf8] sm:$0xff] %v1803
          %v1836 = vld [vmem:[#allocation3] sm:$0x1]
          %v1837 = vadd.f32 %v1836, %v1477
          %vm1838 = vcmask 0
          %1839 = vst.msk [vmem:[#allocation3] sm:$0x1] %vm1838, %v1837
          %v1840 = vld [vmem:[#allocation4] sm:$0x1]
          %v1841 = vadd.f32 %v1840, %v1550
          %1842 = vst.msk [vmem:[#allocation4] sm:$0x1] %vm1838, %v1841
        $region90: #{depthwise_separable_conv.1} parent=77 // pred_fallthru
          _
        %p1843 = scmp.eq.s32.totalorder %s27, 1
        // Predicated region
        $region91: #{depthwise_separable_conv.1} parent=77 // pred_check
          %p1844 = pneg %p1843
        $region92: #{depthwise_separable_conv.1} parent=77 // pred_check_branch
          %1846 = sbr.rel (%p1844) target = $region94
        $region93: #{depthwise_separable_conv.1} parent=77 // pred_region
          %v1847 = vld [vmem:[#allocation3] sm:$0x1]
          %v1848 = vmul.f32 %v1847, 1.5258789e-05
          %v1849 = vld [vmem:[#allocation4] sm:$0x1]
          %v1850 = vmul.f32 %v1849, 1.5258789e-05
          %v1851 = vmul.f32 %v1848, %v1848
          %v1852 = vsub.f32 %v1850, %v1851
          %v1853 = vmax.f32 %v1852, 0.0
          %v1854 = vadd.f32 %v1853, 1e-08
          %v1855 = vrsqrt.pop %v1854
          %v1856 = vmul.f32 %v1855, %v1854
          %v1857 = vmul.f32 %v1856, %v1855
          %v1858 = vmul.f32 0.5, %v1857
          %v1859 = vsub.f32 1.5, %v1858
          %v1860 = vmul.f32 %v1855, %v1859
          %vm1861 = vweird.f32 %v1854
          %vm1862 = vweird.f32 %v1855
          %vm1863 = vmor %vm1861, %vm1862
          %v1864 = vsel %vm1863, %v1855, %v1860
          %v1865 = vld [vmem:[#allocation2] sm:$0xff]
          %v1866 = vld [vmem:[#allocation2 + $0x8] sm:$0xff]
          %v1867 = vld [vmem:[#allocation2 + $0x10] sm:$0xff]
          %v1868 = vld [vmem:[#allocation2 + $0x18] sm:$0xff]
          %v1869 = vld [vmem:[#allocation2 + $0x20] sm:$0xff]
          %v1870 = vld [vmem:[#allocation2 + $0x28] sm:$0xff]
          %v1871 = vld [vmem:[#allocation2 + $0x30] sm:$0xff]
          %v1872 = vld [vmem:[#allocation2 + $0x38] sm:$0xff]
          %v1873 = vld [vmem:[#allocation2 + $0x40] sm:$0xff]
          %v1874 = vld [vmem:[#allocation2 + $0x48] sm:$0xff]
          %v1875 = vld [vmem:[#allocation2 + $0x50] sm:$0xff]
          %v1876 = vld [vmem:[#allocation2 + $0x58] sm:$0xff]
          %v1877 = vld [vmem:[#allocation2 + $0x60] sm:$0xff]
          %v1878 = vld [vmem:[#allocation2 + $0x68] sm:$0xff]
          %v1879 = vld [vmem:[#allocation2 + $0x70] sm:$0xff]
          %v1880 = vld [vmem:[#allocation2 + $0x78] sm:$0xff]
          %v1881 = vld [vmem:[#allocation2 + $0x80] sm:$0xff]
          %v1882 = vld [vmem:[#allocation2 + $0x88] sm:$0xff]
          %v1883 = vld [vmem:[#allocation2 + $0x90] sm:$0xff]
          %v1884 = vld [vmem:[#allocation2 + $0x98] sm:$0xff]
          %v1885 = vld [vmem:[#allocation2 + $0xa0] sm:$0xff]
          %v1886 = vld [vmem:[#allocation2 + $0xa8] sm:$0xff]
          %v1887 = vld [vmem:[#allocation2 + $0xb0] sm:$0xff]
          %v1888 = vld [vmem:[#allocation2 + $0xb8] sm:$0xff]
          %v1889 = vld [vmem:[#allocation2 + $0xc0] sm:$0xff]
          %v1890 = vld [vmem:[#allocation2 + $0xc8] sm:$0xff]
          %v1891 = vld [vmem:[#allocation2 + $0xd0] sm:$0xff]
          %v1892 = vld [vmem:[#allocation2 + $0xd8] sm:$0xff]
          %v1893 = vld [vmem:[#allocation2 + $0xe0] sm:$0xff]
          %v1894 = vld [vmem:[#allocation2 + $0xe8] sm:$0xff]
          %v1895 = vld [vmem:[#allocation2 + $0xf0] sm:$0xff]
          %v1896 = vld [vmem:[#allocation2 + $0xf8] sm:$0xff]
          %v1898 = vperm.slane %v1864, 0
          %1899 = vset.pattern.permute.xlu0 0
          %1900 = vperm.xlu0 %1899, %v1898
          %v1901 = vpop.permute.xlu0 %1900
          %v1903 = vmul.f32 %v1901, %v1865
          %v1904 = vmul.f32 %v1901, %v1866
          %v1905 = vmul.f32 %v1901, %v1867
          %v1906 = vmul.f32 %v1901, %v1868
          %v1907 = vmul.f32 %v1901, %v1869
          %v1908 = vmul.f32 %v1901, %v1870
          %v1909 = vmul.f32 %v1901, %v1871
          %v1910 = vmul.f32 %v1901, %v1872
          %v1911 = vmul.f32 %v1901, %v1873
          %v1912 = vmul.f32 %v1901, %v1874
          %v1913 = vmul.f32 %v1901, %v1875
          %v1914 = vmul.f32 %v1901, %v1876
          %v1915 = vmul.f32 %v1901, %v1877
          %v1916 = vmul.f32 %v1901, %v1878
          %v1917 = vmul.f32 %v1901, %v1879
          %v1918 = vmul.f32 %v1901, %v1880
          %v1919 = vmul.f32 %v1901, %v1881
          %v1920 = vmul.f32 %v1901, %v1882
          %v1921 = vmul.f32 %v1901, %v1883
          %v1922 = vmul.f32 %v1901, %v1884
          %v1923 = vmul.f32 %v1901, %v1885
          %v1924 = vmul.f32 %v1901, %v1886
          %v1925 = vmul.f32 %v1901, %v1887
          %v1926 = vmul.f32 %v1901, %v1888
          %v1927 = vmul.f32 %v1901, %v1889
          %v1928 = vmul.f32 %v1901, %v1890
          %v1929 = vmul.f32 %v1901, %v1891
          %v1930 = vmul.f32 %v1901, %v1892
          %v1931 = vmul.f32 %v1901, %v1893
          %v1932 = vmul.f32 %v1901, %v1894
          %v1933 = vmul.f32 %v1901, %v1895
          %v1934 = vmul.f32 %v1901, %v1896
          %v1935 = vmul.f32 %v1864, %v1848
          %v1936 = vld [vmem:[%s4] sm:$0xff]
          %v1937 = vld [vmem:[%s4 + $0x8] sm:$0xff]
          %v1938 = vld [vmem:[%s4 + $0x10] sm:$0xff]
          %v1939 = vld [vmem:[%s4 + $0x18] sm:$0xff]
          %v1940 = vld [vmem:[%s4 + $0x20] sm:$0xff]
          %v1941 = vld [vmem:[%s4 + $0x28] sm:$0xff]
          %v1942 = vld [vmem:[%s4 + $0x30] sm:$0xff]
          %v1943 = vld [vmem:[%s4 + $0x38] sm:$0xff]
          %v1944 = vld [vmem:[%s4 + $0x40] sm:$0xff]
          %v1945 = vld [vmem:[%s4 + $0x48] sm:$0xff]
          %v1946 = vld [vmem:[%s4 + $0x50] sm:$0xff]
          %v1947 = vld [vmem:[%s4 + $0x58] sm:$0xff]
          %v1948 = vld [vmem:[%s4 + $0x60] sm:$0xff]
          %v1949 = vld [vmem:[%s4 + $0x68] sm:$0xff]
          %v1950 = vld [vmem:[%s4 + $0x70] sm:$0xff]
          %v1951 = vld [vmem:[%s4 + $0x78] sm:$0xff]
          %v1953 = vperm.slane %v1935, 0
          %v1955 = vmul.f32 %v1953, %v1936
          %v1956 = vmul.f32 %v1953, %v1937
          %v1957 = vmul.f32 %v1953, %v1938
          %v1958 = vmul.f32 %v1953, %v1939
          %v1959 = vmul.f32 %v1953, %v1940
          %v1960 = vmul.f32 %v1953, %v1941
          %v1961 = vmul.f32 %v1953, %v1942
          %v1962 = vmul.f32 %v1953, %v1943
          %v1963 = vmul.f32 %v1953, %v1944
          %v1964 = vmul.f32 %v1953, %v1945
          %v1965 = vmul.f32 %v1953, %v1946
          %v1966 = vmul.f32 %v1953, %v1947
          %v1967 = vmul.f32 %v1953, %v1948
          %v1968 = vmul.f32 %v1953, %v1949
          %v1969 = vmul.f32 %v1953, %v1950
          %v1970 = vmul.f32 %v1953, %v1951
          %1972 = vset.pattern.permute.xlu0 0
          %1973 = vperm.xlu0 %1972, %v1955
          %v1974 = vpop.permute.xlu0 %1973
          %1977 = vset.pattern.permute.xlu0 0
          %1978 = vperm.xlu0 %1977, %v1956
          %v1979 = vpop.permute.xlu0 %1978
          %1982 = vset.pattern.permute.xlu0 0
          %1983 = vperm.xlu0 %1982, %v1957
          %v1984 = vpop.permute.xlu0 %1983
          %1987 = vset.pattern.permute.xlu0 0
          %1988 = vperm.xlu0 %1987, %v1958
          %v1989 = vpop.permute.xlu0 %1988
          %1992 = vset.pattern.permute.xlu0 0
          %1993 = vperm.xlu0 %1992, %v1959
          %v1994 = vpop.permute.xlu0 %1993
          %1997 = vset.pattern.permute.xlu0 0
          %1998 = vperm.xlu0 %1997, %v1960
          %v1999 = vpop.permute.xlu0 %1998
          %2002 = vset.pattern.permute.xlu0 0
          %2003 = vperm.xlu0 %2002, %v1961
          %v2004 = vpop.permute.xlu0 %2003
          %2007 = vset.pattern.permute.xlu0 0
          %2008 = vperm.xlu0 %2007, %v1962
          %v2009 = vpop.permute.xlu0 %2008
          %2012 = vset.pattern.permute.xlu0 0
          %2013 = vperm.xlu0 %2012, %v1963
          %v2014 = vpop.permute.xlu0 %2013
          %2017 = vset.pattern.permute.xlu0 0
          %2018 = vperm.xlu0 %2017, %v1964
          %v2019 = vpop.permute.xlu0 %2018
          %2022 = vset.pattern.permute.xlu0 0
          %2023 = vperm.xlu0 %2022, %v1965
          %v2024 = vpop.permute.xlu0 %2023
          %2027 = vset.pattern.permute.xlu0 0
          %2028 = vperm.xlu0 %2027, %v1966
          %v2029 = vpop.permute.xlu0 %2028
          %2032 = vset.pattern.permute.xlu0 0
          %2033 = vperm.xlu0 %2032, %v1967
          %v2034 = vpop.permute.xlu0 %2033
          %2037 = vset.pattern.permute.xlu0 0
          %2038 = vperm.xlu0 %2037, %v1968
          %v2039 = vpop.permute.xlu0 %2038
          %2042 = vset.pattern.permute.xlu0 0
          %2043 = vperm.xlu0 %2042, %v1969
          %v2044 = vpop.permute.xlu0 %2043
          %2047 = vset.pattern.permute.xlu0 0
          %2048 = vperm.xlu0 %2047, %v1970
          %v2049 = vpop.permute.xlu0 %2048
          %v2051 = vsub.f32 %v1903, %v1974
          %v2052 = vsub.f32 %v1904, %v1974
          %v2053 = vsub.f32 %v1905, %v1979
          %v2054 = vsub.f32 %v1906, %v1979
          %v2055 = vsub.f32 %v1907, %v1984
          %v2056 = vsub.f32 %v1908, %v1984
          %v2057 = vsub.f32 %v1909, %v1989
          %v2058 = vsub.f32 %v1910, %v1989
          %v2059 = vsub.f32 %v1911, %v1994
          %v2060 = vsub.f32 %v1912, %v1994
          %v2061 = vsub.f32 %v1913, %v1999
          %v2062 = vsub.f32 %v1914, %v1999
          %v2063 = vsub.f32 %v1915, %v2004
          %v2064 = vsub.f32 %v1916, %v2004
          %v2065 = vsub.f32 %v1917, %v2009
          %v2066 = vsub.f32 %v1918, %v2009
          %v2067 = vsub.f32 %v1919, %v2014
          %v2068 = vsub.f32 %v1920, %v2014
          %v2069 = vsub.f32 %v1921, %v2019
          %v2070 = vsub.f32 %v1922, %v2019
          %v2071 = vsub.f32 %v1923, %v2024
          %v2072 = vsub.f32 %v1924, %v2024
          %v2073 = vsub.f32 %v1925, %v2029
          %v2074 = vsub.f32 %v1926, %v2029
          %v2075 = vsub.f32 %v1927, %v2034
          %v2076 = vsub.f32 %v1928, %v2034
          %v2077 = vsub.f32 %v1929, %v2039
          %v2078 = vsub.f32 %v1930, %v2039
          %v2079 = vsub.f32 %v1931, %v2044
          %v2080 = vsub.f32 %v1932, %v2044
          %v2081 = vsub.f32 %v1933, %v2049
          %v2082 = vsub.f32 %v1934, %v2049
          %v2083 = vld [vmem:[%s5] sm:$0xff]
          %v2084 = vld [vmem:[%s5 + $0x8] sm:$0xff]
          %v2085 = vld [vmem:[%s5 + $0x10] sm:$0xff]
          %v2086 = vld [vmem:[%s5 + $0x18] sm:$0xff]
          %v2087 = vld [vmem:[%s5 + $0x20] sm:$0xff]
          %v2088 = vld [vmem:[%s5 + $0x28] sm:$0xff]
          %v2089 = vld [vmem:[%s5 + $0x30] sm:$0xff]
          %v2090 = vld [vmem:[%s5 + $0x38] sm:$0xff]
          %v2091 = vld [vmem:[%s5 + $0x40] sm:$0xff]
          %v2092 = vld [vmem:[%s5 + $0x48] sm:$0xff]
          %v2093 = vld [vmem:[%s5 + $0x50] sm:$0xff]
          %v2094 = vld [vmem:[%s5 + $0x58] sm:$0xff]
          %v2095 = vld [vmem:[%s5 + $0x60] sm:$0xff]
          %v2096 = vld [vmem:[%s5 + $0x68] sm:$0xff]
          %v2097 = vld [vmem:[%s5 + $0x70] sm:$0xff]
          %v2098 = vld [vmem:[%s5 + $0x78] sm:$0xff]
          %2100 = vset.pattern.permute.xlu0 0
          %2101 = vperm.xlu0 %2100, %v2083
          %v2102 = vpop.permute.xlu0 %2101
          %2105 = vset.pattern.permute.xlu0 0
          %2106 = vperm.xlu0 %2105, %v2084
          %v2107 = vpop.permute.xlu0 %2106
          %2110 = vset.pattern.permute.xlu0 0
          %2111 = vperm.xlu0 %2110, %v2085
          %v2112 = vpop.permute.xlu0 %2111
          %2115 = vset.pattern.permute.xlu0 0
          %2116 = vperm.xlu0 %2115, %v2086
          %v2117 = vpop.permute.xlu0 %2116
          %2120 = vset.pattern.permute.xlu0 0
          %2121 = vperm.xlu0 %2120, %v2087
          %v2122 = vpop.permute.xlu0 %2121
          %2125 = vset.pattern.permute.xlu0 0
          %2126 = vperm.xlu0 %2125, %v2088
          %v2127 = vpop.permute.xlu0 %2126
          %2130 = vset.pattern.permute.xlu0 0
          %2131 = vperm.xlu0 %2130, %v2089
          %v2132 = vpop.permute.xlu0 %2131
          %2135 = vset.pattern.permute.xlu0 0
          %2136 = vperm.xlu0 %2135, %v2090
          %v2137 = vpop.permute.xlu0 %2136
          %2140 = vset.pattern.permute.xlu0 0
          %2141 = vperm.xlu0 %2140, %v2091
          %v2142 = vpop.permute.xlu0 %2141
          %2145 = vset.pattern.permute.xlu0 0
          %2146 = vperm.xlu0 %2145, %v2092
          %v2147 = vpop.permute.xlu0 %2146
          %2150 = vset.pattern.permute.xlu0 0
          %2151 = vperm.xlu0 %2150, %v2093
          %v2152 = vpop.permute.xlu0 %2151
          %2155 = vset.pattern.permute.xlu0 0
          %2156 = vperm.xlu0 %2155, %v2094
          %v2157 = vpop.permute.xlu0 %2156
          %2160 = vset.pattern.permute.xlu0 0
          %2161 = vperm.xlu0 %2160, %v2095
          %v2162 = vpop.permute.xlu0 %2161
          %2165 = vset.pattern.permute.xlu0 0
          %2166 = vperm.xlu0 %2165, %v2096
          %v2167 = vpop.permute.xlu0 %2166
          %2170 = vset.pattern.permute.xlu0 0
          %2171 = vperm.xlu0 %2170, %v2097
          %v2172 = vpop.permute.xlu0 %2171
          %2175 = vset.pattern.permute.xlu0 0
          %2176 = vperm.xlu0 %2175, %v2098
          %v2177 = vpop.permute.xlu0 %2176
          %v2179 = vadd.f32 %v2051, %v2102
          %v2180 = vadd.f32 %v2052, %v2102
          %v2181 = vadd.f32 %v2053, %v2107
          %v2182 = vadd.f32 %v2054, %v2107
          %v2183 = vadd.f32 %v2055, %v2112
          %v2184 = vadd.f32 %v2056, %v2112
          %v2185 = vadd.f32 %v2057, %v2117
          %v2186 = vadd.f32 %v2058, %v2117
          %v2187 = vadd.f32 %v2059, %v2122
          %v2188 = vadd.f32 %v2060, %v2122
          %v2189 = vadd.f32 %v2061, %v2127
          %v2190 = vadd.f32 %v2062, %v2127
          %v2191 = vadd.f32 %v2063, %v2132
          %v2192 = vadd.f32 %v2064, %v2132
          %v2193 = vadd.f32 %v2065, %v2137
          %v2194 = vadd.f32 %v2066, %v2137
          %v2195 = vadd.f32 %v2067, %v2142
          %v2196 = vadd.f32 %v2068, %v2142
          %v2197 = vadd.f32 %v2069, %v2147
          %v2198 = vadd.f32 %v2070, %v2147
          %v2199 = vadd.f32 %v2071, %v2152
          %v2200 = vadd.f32 %v2072, %v2152
          %v2201 = vadd.f32 %v2073, %v2157
          %v2202 = vadd.f32 %v2074, %v2157
          %v2203 = vadd.f32 %v2075, %v2162
          %v2204 = vadd.f32 %v2076, %v2162
          %v2205 = vadd.f32 %v2077, %v2167
          %v2206 = vadd.f32 %v2078, %v2167
          %v2207 = vadd.f32 %v2079, %v2172
          %v2208 = vadd.f32 %v2080, %v2172
          %v2209 = vadd.f32 %v2081, %v2177
          %v2210 = vadd.f32 %v2082, %v2177
          %2211 = vst [vmem:[%s402] sm:$0xff] %v2179
          %2212 = vst [vmem:[%s402 + $0x8] sm:$0xff] %v2180
          %2213 = vst [vmem:[%s402 + $0x10] sm:$0xff] %v2181
          %2214 = vst [vmem:[%s402 + $0x18] sm:$0xff] %v2182
          %2215 = vst [vmem:[%s402 + $0x20] sm:$0xff] %v2183
          %2216 = vst [vmem:[%s402 + $0x28] sm:$0xff] %v2184
          %2217 = vst [vmem:[%s402 + $0x30] sm:$0xff] %v2185
          %2218 = vst [vmem:[%s402 + $0x38] sm:$0xff] %v2186
          %2219 = vst [vmem:[%s402 + $0x40] sm:$0xff] %v2187
          %2220 = vst [vmem:[%s402 + $0x48] sm:$0xff] %v2188
          %2221 = vst [vmem:[%s402 + $0x50] sm:$0xff] %v2189
          %2222 = vst [vmem:[%s402 + $0x58] sm:$0xff] %v2190
          %2223 = vst [vmem:[%s402 + $0x60] sm:$0xff] %v2191
          %2224 = vst [vmem:[%s402 + $0x68] sm:$0xff] %v2192
          %2225 = vst [vmem:[%s402 + $0x70] sm:$0xff] %v2193
          %2226 = vst [vmem:[%s402 + $0x78] sm:$0xff] %v2194
          %2227 = vst [vmem:[%s402 + $0x80] sm:$0xff] %v2195
          %2228 = vst [vmem:[%s402 + $0x88] sm:$0xff] %v2196
          %2229 = vst [vmem:[%s402 + $0x90] sm:$0xff] %v2197
          %2230 = vst [vmem:[%s402 + $0x98] sm:$0xff] %v2198
          %2231 = vst [vmem:[%s402 + $0xa0] sm:$0xff] %v2199
          %2232 = vst [vmem:[%s402 + $0xa8] sm:$0xff] %v2200
          %2233 = vst [vmem:[%s402 + $0xb0] sm:$0xff] %v2201
          %2234 = vst [vmem:[%s402 + $0xb8] sm:$0xff] %v2202
          %2235 = vst [vmem:[%s402 + $0xc0] sm:$0xff] %v2203
          %2236 = vst [vmem:[%s402 + $0xc8] sm:$0xff] %v2204
          %2237 = vst [vmem:[%s402 + $0xd0] sm:$0xff] %v2205
          %2238 = vst [vmem:[%s402 + $0xd8] sm:$0xff] %v2206
          %2239 = vst [vmem:[%s402 + $0xe0] sm:$0xff] %v2207
          %2240 = vst [vmem:[%s402 + $0xe8] sm:$0xff] %v2208
          %2241 = vst [vmem:[%s402 + $0xf0] sm:$0xff] %v2209
          %2242 = vst [vmem:[%s402 + $0xf8] sm:$0xff] %v2210
        $region94: #{depthwise_separable_conv.1} parent=77 // pred_fallthru
          _
        %s2243 = sand.u32 %s185, 1
        %s2244 = scalar_lea.sflag [#allocation8], %s2243
        %s2245 = sand.u32 %s185, 1
        %s2246 = smul.addr %s2245, 256
        %s2247 = scalar_lea.vmem [#allocation7], %s2246
        // Predicated region
        $region95: #{depthwise_separable_conv.1} parent=77 // pred_check
          %p2248 = pneg %p195
        $region96: #{depthwise_separable_conv.1} parent=77 // pred_check_branch
          %2250 = sbr.rel (%p2248) target = $region98
        $region97: #{depthwise_separable_conv.1} parent=77 // pred_region
          %2252 = vsyncadd %s2244, 0
          %s2253 = smul.addr %s26, 32
          %s2254 = smul.addr %s2253, 8
          %s2255 = scalar_lea.hbm %s6, %s2254
          %s2256 = sshll.u32 %s2247, 4
          %s2257 = int_to_ptr.vmem [resolvable:$true] %s2256
          %s2258 = sshll.u32 %s2255, 4
          %s2259 = int_to_ptr.hbm [resolvable:$true] %s2258
          %2264 = dma.vmem_to_hbm [thread:$0]  %s2257, 4096, %s2259, %s2244, 256, 256, 16
        $region98: #{depthwise_separable_conv.1} parent=77 // pred_fallthru
          _
      $region78: #{depthwise_separable_conv.1} parent=5 // pred_fallthru
        _
      %p2265 = scmp.le.s32.totalorder 2, %s17
      // Predicated region
      $region99: #{depthwise_separable_conv.1} parent=5 // pred_check
        %p2266 = pneg %p2265
      $region100: #{depthwise_separable_conv.1} parent=5 // pred_check_branch
        %2268 = sbr.rel (%p2266) target = $region102
      $region101: #{depthwise_separable_conv.1} parent=5 // pred_region
        %s2269 = ssub.s32 %s17, 2
        // Predicated region
        $region103: #{depthwise_separable_conv.1} parent=101 // pred_check
          %p2270 = pneg %p201
        $region104: #{depthwise_separable_conv.1} parent=101 // pred_check_branch
          %2272 = sbr.rel (%p2270) target = $region106
        $region105: #{depthwise_separable_conv.1} parent=101 // pred_region
          %s2273 = sand.u32 %s186, 1
          %s2274 = scalar_lea.sflag [#allocation8], %s2273
          %s2275 = sand.u32 %s186, 1
          %s2276 = smul.addr %s2275, 256
          %s2277 = scalar_lea.vmem [#allocation7], %s2276
          %2279 = dma.done %s2274, 4096
        $region106: #{depthwise_separable_conv.1} parent=101 // pred_fallthru
          _
      $region102: #{depthwise_separable_conv.1} parent=5 // pred_fallthru
        _
    $region6: #{depthwise_separable_conv.1} parent=1 // loop_footer
      %s21 = sadd.s32 1, %s17
    $region7: #{depthwise_separable_conv.1} parent=1 // loop_footer_branch
      %16 = sbr.rel target = $region3
    $region8: #{depthwise_separable_conv.1} parent=1 // loop_exit
      _
    %2280 = vsyncpa [#allocation8], 1
    %s2281 = scalar_lea.sflag [#allocation8], 1
    %2282 = vsyncpa %s2281, 1

</llo_original>
